<compile_context>
chip_gen: v7x
topology: tpu7x:2x2x1
jax: 0.10.0
libtpu: 0.0.40
codegen_flags: <defaults>
</compile_context>

<pallas_src>
import numpy as np
import jax
import jax.numpy as jnp
from jax.experimental import pallas as pl
from jax.experimental.pallas import tpu as pltpu

H1 = 256
H2 = 512


def _round_up(x, m):
    return -(-x // m) * m


def _default_tile_b():
    # 256-row batch tiles saturate the 2x256^2 MXUs on v6e/v7x; v5e's 4x128^2 MXU and
    # lower HBM BW make 128 the better default there.
    try:
        kind = jax.devices()[0].device_kind.lower()
    except Exception:
        return 256
    return 128 if "v5" in kind else 256


def _sigmoid_epilogue(logits_f32, out_dtype):
    # sigmoid(x) = 1 / (1 + exp(-x)): exp goes to the EUP, and approx reciprocal keeps
    # the divide in the EUP slot (free relative to VALU) instead of a VPU divide.
    e = jnp.exp(-logits_f32)
    return pl.reciprocal(1.0 + e, approx=True).astype(out_dtype)


def _decoder_kernel_batch_major(z_ref, w1_ref, b1_ref, w2_ref, b2_ref, w3_ref, b3_ref,
                                out_ref, h2_ref):
    """grid = (batch_tiles, out_tiles).  h1/h2 depend only on the batch tile, so they
    are computed once per batch tile (n == 0) and cached in VMEM scratch; every n step
    then runs only its fc3 out_dim slice + sigmoid."""
    n = pl.program_id(1)

    @pl.when(n == 0)
    def _():
        z = z_ref[...].astype(jnp.bfloat16)
        h1 = jnp.dot(z, w1_ref[...], preferred_element_type=jnp.float32)
        h1 = jnp.maximum(h1 + b1_ref[...], 0.0)                               # ReLU
        h2 = jnp.dot(h1.astype(jnp.bfloat16), w2_ref[...],
                     preferred_element_type=jnp.float32)
        h2_ref[...] = jnp.maximum(h2 + b2_ref[...], 0.0).astype(h2_ref.dtype)  # ReLU

    logits = jnp.dot(h2_ref[...], w3_ref[...],
                     preferred_element_type=jnp.float32) + b3_ref[...]
    out_ref[...] = _sigmoid_epilogue(logits, out_ref.dtype)


def _decoder_kernel_out_major(z_ref, w1_ref, b1_ref, w2_ref, b2_ref, w3_ref, b3_ref,
                              out_ref):
    """grid = (out_tiles,) for a single batch tile.  fc1/fc2 are recomputed per out
    tile (negligible vs. the fc3 tile) so the out_dim axis can be the megacore-parallel
    axis even when there is only one batch tile (small-batch decode on v7x)."""
    z = z_ref[...].astype(jnp.bfloat16)
    h1 = jnp.maximum(
        jnp.dot(z, w1_ref[...], preferred_element_type=jnp.float32) + b1_ref[...], 0.0)
    h2 = jnp.maximum(
        jnp.dot(h1.astype(jnp.bfloat16), w2_ref[...],
                preferred_element_type=jnp.float32) + b2_ref[...], 0.0)
    logits = jnp.dot(h2.astype(jnp.bfloat16), w3_ref[...],
                     preferred_element_type=jnp.float32) + b3_ref[...]
    out_ref[...] = _sigmoid_epilogue(logits, out_ref.dtype)


def decoder_forward(z, params, *, tile_b=None, tile_n=2048,
                    out_dtype=jnp.bfloat16, single_buffer_weights=True):
    """z: (B, latent_dim) float32.  Returns (B, prod(output_shape)) in `out_dtype`."""
    w1, b1, w2, b2, w3, b3 = params
    B, latent_dim = z.shape
    out_dim = w3.shape[1]

    if tile_b is None:
        tile_b = _default_tile_b()

    # ---- batch (M) tiling: full-height MXU pushes; tiny batches padded to 16 rows
    #      (bf16 minimum sublane tile).
    if B >= tile_b:
        tb = tile_b
    else:
        tb = max(16, _round_up(B, 16))
    b_pad = _round_up(B, tb)
    if b_pad != B:
        z = jnp.pad(z, ((0, b_pad - B), (0, 0)))
    batch_tiles = b_pad // tb

    # ---- fc3 output (N) tiling: always bound the w3 block and keep stores lane-dense
    #      by padding out_dim up to a multiple of the tile (multiple of 128).
    if out_dim > tile_n:
        tn = tile_n
    else:
        tn = _round_up(out_dim, 128)
    out_pad = _round_up(out_dim, tn)
    n_grid = out_pad // tn
    if out_pad != out_dim:
        w3 = jnp.pad(w3, ((0, 0), (0, out_pad - out_dim)))
        b3 = jnp.pad(b3, ((0, 0), (0, out_pad - out_dim)))

    out_bytes = jnp.dtype(out_dtype).itemsize
    batch_major = batch_tiles >= 2

    # Constant-index weights/biases never re-DMA after step 0 -> single-buffer them.
    resident = dict(pipeline_mode=pl.Buffered(1)) if single_buffer_weights else {}
    resident3 = resident if n_grid == 1 else {}   # w3/b3 change along n when tiled

    # ---- cost estimate / VMEM budget hints
    flops = 2 * b_pad * (latent_dim * H1 + H1 * H2 + H2 * out_pad)
    if not batch_major:
        flops += 2 * b_pad * (latent_dim * H1 + H1 * H2) * max(n_grid - 1, 0)
    bytes_accessed = (b_pad * latent_dim * 4                     # z (f32 in)
                      + (w1.size + w2.size + w3.size) * 2        # bf16 weights
                      + (b1.size + b2.size + b3.size) * 4        # f32 biases
                      + b_pad * out_pad * out_bytes)             # output writeback
    vmem_needed = (
        (latent_dim * H1 + H1 * H2) * 2 + (H1 + H2) * 4          # resident w1/w2/b1/b2
        + H2 * tn * 2 * (1 if n_grid == 1 else 2)                # w3 block(s)
        + tn * 4 * (1 if n_grid == 1 else 2)                     # b3 block(s)
        + tb * latent_dim * 4 * 2                                # z blocks (2-buffered)
        + tb * tn * out_bytes * 2                                # out blocks (2-buffered)
        + (tb * H2 * 2 if batch_major else 0))                   # h2 scratch
    vmem_limit = int(min(max(vmem_needed + 8 * 2**20, 16 * 2**20), 48 * 2**20))

    if batch_major:
        grid = (batch_tiles, n_grid)
        in_specs = [
            pl.BlockSpec((tb, latent_dim), lambda i, n: (i, 0)),                # z
            pl.BlockSpec((latent_dim, H1), lambda i, n: (0, 0), **resident),    # w1
            pl.BlockSpec((1, H1),          lambda i, n: (0, 0), **resident),    # b1
            pl.BlockSpec((H1, H2),         lambda i, n: (0, 0), **resident),    # w2
            pl.BlockSpec((1, H2),          lambda i, n: (0, 0), **resident),    # b2
            pl.BlockSpec((H2, tn),         lambda i, n: (0, n), **resident3),   # w3
            pl.BlockSpec((1, tn),          lambda i, n: (0, n), **resident3),   # b3
        ]
        out_specs = pl.BlockSpec((tb, tn), lambda i, n: (i, n))
        kernel_fn = _decoder_kernel_batch_major
        scratch_shapes = [pltpu.VMEM((tb, H2), jnp.bfloat16)]   # cached h2 / batch tile
        dim_sem = ("parallel", "arbitrary")
    else:
        grid = (n_grid,)
        in_specs = [
            pl.BlockSpec((tb, latent_dim), lambda n: (0, 0)),                   # z
            pl.BlockSpec((latent_dim, H1), lambda n: (0, 0), **resident),       # w1
            pl.BlockSpec((1, H1),          lambda n: (0, 0), **resident),       # b1
            pl.BlockSpec((H1, H2),         lambda n: (0, 0), **resident),       # w2
            pl.BlockSpec((1, H2),          lambda n: (0, 0), **resident),       # b2
            pl.BlockSpec((H2, tn),         lambda n: (0, n), **resident3),      # w3
            pl.BlockSpec((1, tn),          lambda n: (0, n), **resident3),      # b3
        ]
        out_specs = pl.BlockSpec((tb, tn), lambda n: (0, n))
        kernel_fn = _decoder_kernel_out_major
        scratch_shapes = []
        dim_sem = ("parallel",)

    out = pl.pallas_call(
        kernel_fn,
        out_shape=jax.ShapeDtypeStruct((b_pad, out_pad), out_dtype),
        grid=grid,
        in_specs=in_specs,
        out_specs=out_specs,
        scratch_shapes=scratch_shapes,
        compiler_params=pltpu.CompilerParams(
            dimension_semantics=dim_sem,
            vmem_limit_bytes=vmem_limit,
        ),
        cost_estimate=pl.CostEstimate(
            flops=flops,
            transcendentals=b_pad * out_pad,    # sigmoid exp
            bytes_accessed=bytes_accessed,
        ),
    )(z, w1, b1, w2, b2, w3, b3)

    if b_pad != B or out_pad != out_dim:
        out = out[:B, :out_dim]
    return out


def init_decoder_params(key, output_shape, latent_dim):
    """Deterministic init mirroring nn.Linear's U(-1/sqrt(fan_in), 1/sqrt(fan_in)).

    Weights are stored bf16 (MXU inputs / half HBM traffic); biases stay f32.
    """
    out_dim = int(np.prod(output_shape))
    dims = [(latent_dim, H1), (H1, H2), (H2, out_dim)]
    params = []
    for fan_in, fan_out in dims:
        key, kw, kb = jax.random.split(key, 3)
        bound = 1.0 / np.sqrt(fan_in)
        w = jax.random.uniform(kw, (fan_in, fan_out), jnp.float32, -bound, bound)
        b = jax.random.uniform(kb, (1, fan_out), jnp.float32, -bound, bound)
        params += [w.astype(jnp.bfloat16), b]
    return tuple(params)


def decoder_reference(z, params):
    """Plain-JAX reference mirroring the kernel's bf16-input / f32-accumulate numerics."""
    w1, b1, w2, b2, w3, b3 = params
    f32 = jnp.float32
    h1 = jnp.maximum(jnp.dot(z.astype(jnp.bfloat16).astype(f32), w1.astype(f32)) + b1, 0.0)
    h2 = jnp.maximum(jnp.dot(h1.astype(jnp.bfloat16).astype(f32), w2.astype(f32)) + b2, 0.0)
    logits = jnp.dot(h2.astype(jnp.bfloat16).astype(f32), w3.astype(f32)) + b3
    return jax.nn.sigmoid(logits)


if __name__ == "__main__":
    key = jax.random.PRNGKey(0)
    output_shape = (1, 16, 16)   # prod = 256
    latent_dim = 32
    batch = 8

    kparam, kz = jax.random.split(key)
    params = init_decoder_params(kparam, output_shape, latent_dim)
    z = jax.random.normal(kz, (batch, latent_dim), jnp.float32)

    try:
        out = jax.block_until_ready(decoder_forward(z, params))
    except Exception:
        # Fallback if pipeline_mode=pl.Buffered(1) for resident weights is not
        # supported by the installed Pallas version.
        out = jax.block_until_ready(
            decoder_forward(z, params, single_buffer_weights=False))

    ref = decoder_reference(z, params)
    assert out.shape == (batch, int(np.prod(output_shape)))
    np.testing.assert_allclose(np.asarray(out.astype(jnp.float32)),
                               np.asarray(ref), rtol=2e-2, atol=2e-2)

    print("KERNEL_OK")
</pallas_src>

<mosaic_0001>
module attributes {stable_mosaic.version = 11 : i64} {
  func.func @_decoder_kernel_out_major(%arg0: i32, %arg1: memref<16x32xf32, #tpu.memory_space<vmem>>, %arg2: memref<32x256xbf16, #tpu.memory_space<vmem>>, %arg3: memref<1x256xf32, #tpu.memory_space<vmem>>, %arg4: memref<256x512xbf16, #tpu.memory_space<vmem>>, %arg5: memref<1x512xf32, #tpu.memory_space<vmem>>, %arg6: memref<512x256xbf16, #tpu.memory_space<vmem>>, %arg7: memref<1x256xf32, #tpu.memory_space<vmem>>, %arg8: memref<16x256xbf16, #tpu.memory_space<vmem>>) attributes {dimension_semantics = [#tpu.dimension_semantics<parallel>], iteration_bounds = array<i64: 1>, scalar_prefetch = 0 : i64, scratch_operands = 0 : i64, tpu.core_type = #tpu.core_type<tc>, window_params = [{pipeline_mode = #tpu.pipeline_mode<synchronous>, transform_indices = @transform_0, window_bounds = array<i64: 16, 32>}, {pipeline_mode = #tpu.pipeline_mode<synchronous>, transform_indices = @transform_1, window_bounds = array<i64: 32, 256>}, {pipeline_mode = #tpu.pipeline_mode<synchronous>, transform_indices = @transform_2, window_bounds = array<i64: 1, 256>}, {pipeline_mode = #tpu.pipeline_mode<synchronous>, transform_indices = @transform_3, window_bounds = array<i64: 256, 512>}, {pipeline_mode = #tpu.pipeline_mode<synchronous>, transform_indices = @transform_4, window_bounds = array<i64: 1, 512>}, {pipeline_mode = #tpu.pipeline_mode<synchronous>, transform_indices = @transform_5, window_bounds = array<i64: 512, 256>}, {pipeline_mode = #tpu.pipeline_mode<synchronous>, transform_indices = @transform_6, window_bounds = array<i64: 1, 256>}, {transform_indices = @transform_7, window_bounds = array<i64: 16, 256>}]} {
    %c0 = arith.constant 0 : index
    %c0_0 = arith.constant 0 : index
    %0 = vector.load %arg1[%c0, %c0_0] : memref<16x32xf32, #tpu.memory_space<vmem>>, vector<16x32xf32>
    %1 = arith.truncf %0 : vector<16x32xf32> to vector<16x32xbf16>
    %c0_1 = arith.constant 0 : index
    %c0_2 = arith.constant 0 : index
    %2 = vector.load %arg2[%c0_1, %c0_2] : memref<32x256xbf16, #tpu.memory_space<vmem>>, vector<32x256xbf16>
    %cst = arith.constant dense<0.000000e+00> : vector<16x256xf32>
    %3 = tpu.matmul %1, %2, %cst {dimension_numbers = #tpu.dot_dimension_numbers<[1], [0], [0], [1], [0, 0, 1, 1], [], []>} : vector<16x32xbf16>, vector<32x256xbf16>, vector<16x256xf32> -> vector<16x256xf32>
    %c0_3 = arith.constant 0 : index
    %c0_4 = arith.constant 0 : index
    %4 = vector.load %arg3[%c0_3, %c0_4] : memref<1x256xf32, #tpu.memory_space<vmem>>, vector<1x256xf32>
    %5 = vector.broadcast %4 : vector<1x256xf32> to vector<16x256xf32>
    %6 = arith.addf %3, %5 : vector<16x256xf32>
    %cst_5 = arith.constant 0.000000e+00 : f32
    %7 = vector.broadcast %cst_5 : f32 to vector<16x256xf32>
    %8 = arith.maximumf %6, %7 : vector<16x256xf32>
    %9 = arith.truncf %8 : vector<16x256xf32> to vector<16x256xbf16>
    %c0_6 = arith.constant 0 : index
    %c0_7 = arith.constant 0 : index
    %10 = vector.load %arg4[%c0_6, %c0_7] : memref<256x512xbf16, #tpu.memory_space<vmem>>, vector<256x512xbf16>
    %cst_8 = arith.constant dense<0.000000e+00> : vector<16x512xf32>
    %11 = tpu.matmul %9, %10, %cst_8 {dimension_numbers = #tpu.dot_dimension_numbers<[1], [0], [0], [1], [0, 0, 1, 1], [], []>} : vector<16x256xbf16>, vector<256x512xbf16>, vector<16x512xf32> -> vector<16x512xf32>
    %c0_9 = arith.constant 0 : index
    %c0_10 = arith.constant 0 : index
    %12 = vector.load %arg5[%c0_9, %c0_10] : memref<1x512xf32, #tpu.memory_space<vmem>>, vector<1x512xf32>
    %13 = vector.broadcast %12 : vector<1x512xf32> to vector<16x512xf32>
    %14 = arith.addf %11, %13 : vector<16x512xf32>
    %cst_11 = arith.constant 0.000000e+00 : f32
    %15 = vector.broadcast %cst_11 : f32 to vector<16x512xf32>
    %16 = arith.maximumf %14, %15 : vector<16x512xf32>
    %17 = arith.truncf %16 : vector<16x512xf32> to vector<16x512xbf16>
    %c0_12 = arith.constant 0 : index
    %c0_13 = arith.constant 0 : index
    %18 = vector.load %arg6[%c0_12, %c0_13] : memref<512x256xbf16, #tpu.memory_space<vmem>>, vector<512x256xbf16>
    %cst_14 = arith.constant dense<0.000000e+00> : vector<16x256xf32>
    %19 = tpu.matmul %17, %18, %cst_14 {dimension_numbers = #tpu.dot_dimension_numbers<[1], [0], [0], [1], [0, 0, 1, 1], [], []>} : vector<16x512xbf16>, vector<512x256xbf16>, vector<16x256xf32> -> vector<16x256xf32>
    %c0_15 = arith.constant 0 : index
    %c0_16 = arith.constant 0 : index
    %20 = vector.load %arg7[%c0_15, %c0_16] : memref<1x256xf32, #tpu.memory_space<vmem>>, vector<1x256xf32>
    %21 = vector.broadcast %20 : vector<1x256xf32> to vector<16x256xf32>
    %22 = arith.addf %19, %21 : vector<16x256xf32>
    %cst_17 = arith.constant 0.000000e+00 : f32
    %23 = vector.broadcast %cst_17 : f32 to vector<16x256xf32>
    %24 = arith.subf %23, %22 : vector<16x256xf32>
    %25 = math.exp %24 : vector<16x256xf32>
    %cst_18 = arith.constant 1.000000e+00 : f32
    %26 = vector.broadcast %cst_18 : f32 to vector<16x256xf32>
    %27 = arith.addf %26, %25 : vector<16x256xf32>
    %28 = tpu.reciprocal %27 {approx = true} : vector<16x256xf32> -> vector<16x256xf32>
    %29 = arith.truncf %28 : vector<16x256xf32> to vector<16x256xbf16>
    %c0_19 = arith.constant 0 : index
    %c0_20 = arith.constant 0 : index
    %30 = vector.load %arg8[%c0_19, %c0_20] : memref<16x256xbf16, #tpu.memory_space<vmem>>, vector<16x256xbf16>
    tpu.vector_store %arg8[%c0_19, %c0_20], %29 {strides = array<i32>} : memref<16x256xbf16, #tpu.memory_space<vmem>>, vector<16x256xbf16>,
    return
  }
  func.func @transform_0(%arg0: i32) -> (i32, i32) {
    %c0_i32 = arith.constant 0 : i32
    %c0_i32_0 = arith.constant 0 : i32
    %c0_i32_1 = arith.constant 0 : i32
    return %c0_i32, %c0_i32_0 : i32, i32
  }
  func.func @transform_1(%arg0: i32) -> (i32, i32) {
    %c0_i32 = arith.constant 0 : i32
    %c0_i32_0 = arith.constant 0 : i32
    %c0_i32_1 = arith.constant 0 : i32
    return %c0_i32, %c0_i32_0 : i32, i32
  }
  func.func @transform_2(%arg0: i32) -> (i32, i32) {
    %c0_i32 = arith.constant 0 : i32
    %c0_i32_0 = arith.constant 0 : i32
    %c0_i32_1 = arith.constant 0 : i32
    return %c0_i32, %c0_i32_0 : i32, i32
  }
  func.func @transform_3(%arg0: i32) -> (i32, i32) {
    %c0_i32 = arith.constant 0 : i32
    %c0_i32_0 = arith.constant 0 : i32
    %c0_i32_1 = arith.constant 0 : i32
    return %c0_i32, %c0_i32_0 : i32, i32
  }
  func.func @transform_4(%arg0: i32) -> (i32, i32) {
    %c0_i32 = arith.constant 0 : i32
    %c0_i32_0 = arith.constant 0 : i32
    %c0_i32_1 = arith.constant 0 : i32
    return %c0_i32, %c0_i32_0 : i32, i32
  }
  func.func @transform_5(%arg0: i32) -> (i32, i32) {
    %c0_i32 = arith.constant 0 : i32
    %c0_i32_0 = arith.constant 0 : i32
    return %c0_i32, %arg0 : i32, i32
  }
  func.func @transform_6(%arg0: i32) -> (i32, i32) {
    %c0_i32 = arith.constant 0 : i32
    %c0_i32_0 = arith.constant 0 : i32
    return %c0_i32, %arg0 : i32, i32
  }
  func.func @transform_7(%arg0: i32) -> (i32, i32) {
    %c0_i32 = arith.constant 0 : i32
    %c0_i32_0 = arith.constant 0 : i32
    return %c0_i32, %arg0 : i32, i32
  }
}

module attributes {stable_mosaic.version = 11 : i64} {
  func.func @_decoder_kernel_out_major(%arg0: i32, %arg1: memref<16x32xf32, #tpu.memory_space<vmem>>, %arg2: memref<32x256xbf16, #tpu.memory_space<vmem>>, %arg3: memref<1x256xf32, #tpu.memory_space<vmem>>, %arg4: memref<256x512xbf16, #tpu.memory_space<vmem>>, %arg5: memref<1x512xf32, #tpu.memory_space<vmem>>, %arg6: memref<512x256xbf16, #tpu.memory_space<vmem>>, %arg7: memref<1x256xf32, #tpu.memory_space<vmem>>, %arg8: memref<16x256xbf16, #tpu.memory_space<vmem>>) attributes {dimension_semantics = [#tpu.dimension_semantics<parallel>], iteration_bounds = array<i64: 1>, scalar_prefetch = 0 : i64, scratch_operands = 0 : i64, tpu.core_type = #tpu.core_type<tc>, window_params = [{pipeline_mode = #tpu.pipeline_mode<synchronous>, transform_indices = @transform_0, window_bounds = array<i64: 16, 32>}, {pipeline_mode = #tpu.pipeline_mode<synchronous>, transform_indices = @transform_1, window_bounds = array<i64: 32, 256>}, {pipeline_mode = #tpu.pipeline_mode<synchronous>, transform_indices = @transform_2, window_bounds = array<i64: 1, 256>}, {pipeline_mode = #tpu.pipeline_mode<synchronous>, transform_indices = @transform_3, window_bounds = array<i64: 256, 512>}, {pipeline_mode = #tpu.pipeline_mode<synchronous>, transform_indices = @transform_4, window_bounds = array<i64: 1, 512>}, {transform_indices = @transform_5, window_bounds = array<i64: 512, 256>}, {transform_indices = @transform_6, window_bounds = array<i64: 1, 256>}, {transform_indices = @transform_7, window_bounds = array<i64: 16, 256>}]} {
    %c0 = arith.constant 0 : index
    %c0_0 = arith.constant 0 : index
    %0 = vector.load %arg1[%c0, %c0_0] : memref<16x32xf32, #tpu.memory_space<vmem>>, vector<16x32xf32>
    %1 = arith.truncf %0 : vector<16x32xf32> to vector<16x32xbf16>
    %c0_1 = arith.constant 0 : index
    %c0_2 = arith.constant 0 : index
    %2 = vector.load %arg2[%c0_1, %c0_2] : memref<32x256xbf16, #tpu.memory_space<vmem>>, vector<32x256xbf16>
    %cst = arith.constant dense<0.000000e+00> : vector<16x256xf32>
    %3 = tpu.matmul %1, %2, %cst {dimension_numbers = #tpu.dot_dimension_numbers<[1], [0], [0], [1], [0, 0, 1, 1], [], []>} : vector<16x32xbf16>, vector<32x256xbf16>, vector<16x256xf32> -> vector<16x256xf32>
    %c0_3 = arith.constant 0 : index
    %c0_4 = arith.constant 0 : index
    %4 = vector.load %arg3[%c0_3, %c0_4] : memref<1x256xf32, #tpu.memory_space<vmem>>, vector<1x256xf32>
    %5 = vector.broadcast %4 : vector<1x256xf32> to vector<16x256xf32>
    %6 = arith.addf %3, %5 : vector<16x256xf32>
    %cst_5 = arith.constant 0.000000e+00 : f32
    %7 = vector.broadcast %cst_5 : f32 to vector<16x256xf32>
    %8 = arith.maximumf %6, %7 : vector<16x256xf32>
    %9 = arith.truncf %8 : vector<16x256xf32> to vector<16x256xbf16>
    %c0_6 = arith.constant 0 : index
    %c0_7 = arith.constant 0 : index
    %10 = vector.load %arg4[%c0_6, %c0_7] : memref<256x512xbf16, #tpu.memory_space<vmem>>, vector<256x512xbf16>
    %cst_8 = arith.constant dense<0.000000e+00> : vector<16x512xf32>
    %11 = tpu.matmul %9, %10, %cst_8 {dimension_numbers = #tpu.dot_dimension_numbers<[1], [0], [0], [1], [0, 0, 1, 1], [], []>} : vector<16x256xbf16>, vector<256x512xbf16>, vector<16x512xf32> -> vector<16x512xf32>
    %c0_9 = arith.constant 0 : index
    %c0_10 = arith.constant 0 : index
    %12 = vector.load %arg5[%c0_9, %c0_10] : memref<1x512xf32, #tpu.memory_space<vmem>>, vector<1x512xf32>
    %13 = vector.broadcast %12 : vector<1x512xf32> to vector<16x512xf32>
    %14 = arith.addf %11, %13 : vector<16x512xf32>
    %cst_11 = arith.constant 0.000000e+00 : f32
    %15 = vector.broadcast %cst_11 : f32 to vector<16x512xf32>
    %16 = arith.maximumf %14, %15 : vector<16x512xf32>
    %17 = arith.truncf %16 : vector<16x512xf32> to vector<16x512xbf16>
    %c0_12 = arith.constant 0 : index
    %c0_13 = arith.constant 0 : index
    %18 = vector.load %arg6[%c0_12, %c0_13] : memref<512x256xbf16, #tpu.memory_space<vmem>>, vector<512x256xbf16>
    %cst_14 = arith.constant dense<0.000000e+00> : vector<16x256xf32>
    %19 = tpu.matmul %17, %18, %cst_14 {dimension_numbers = #tpu.dot_dimension_numbers<[1], [0], [0], [1], [0, 0, 1, 1], [], []>} : vector<16x512xbf16>, vector<512x256xbf16>, vector<16x256xf32> -> vector<16x256xf32>
    %c0_15 = arith.constant 0 : index
    %c0_16 = arith.constant 0 : index
    %20 = vector.load %arg7[%c0_15, %c0_16] : memref<1x256xf32, #tpu.memory_space<vmem>>, vector<1x256xf32>
    %21 = vector.broadcast %20 : vector<1x256xf32> to vector<16x256xf32>
    %22 = arith.addf %19, %21 : vector<16x256xf32>
    %cst_17 = arith.constant 0.000000e+00 : f32
    %23 = vector.broadcast %cst_17 : f32 to vector<16x256xf32>
    %24 = arith.subf %23, %22 : vector<16x256xf32>
    %25 = math.exp %24 : vector<16x256xf32>
    %cst_18 = arith.constant 1.000000e+00 : f32
    %26 = vector.broadcast %cst_18 : f32 to vector<16x256xf32>
    %27 = arith.addf %26, %25 : vector<16x256xf32>
    %28 = tpu.reciprocal %27 {approx = true} : vector<16x256xf32> -> vector<16x256xf32>
    %29 = arith.truncf %28 : vector<16x256xf32> to vector<16x256xbf16>
    %c0_19 = arith.constant 0 : index
    %c0_20 = arith.constant 0 : index
    %30 = vector.load %arg8[%c0_19, %c0_20] : memref<16x256xbf16, #tpu.memory_space<vmem>>, vector<16x256xbf16>
    tpu.vector_store %arg8[%c0_19, %c0_20], %29 {strides = array<i32>} : memref<16x256xbf16, #tpu.memory_space<vmem>>, vector<16x256xbf16>,
    return
  }
  func.func @transform_0(%arg0: i32) -> (i32, i32) {
    %c0_i32 = arith.constant 0 : i32
    %c0_i32_0 = arith.constant 0 : i32
    %c0_i32_1 = arith.constant 0 : i32
    return %c0_i32, %c0_i32_0 : i32, i32
  }
  func.func @transform_1(%arg0: i32) -> (i32, i32) {
    %c0_i32 = arith.constant 0 : i32
    %c0_i32_0 = arith.constant 0 : i32
    %c0_i32_1 = arith.constant 0 : i32
    return %c0_i32, %c0_i32_0 : i32, i32
  }
  func.func @transform_2(%arg0: i32) -> (i32, i32) {
    %c0_i32 = arith.constant 0 : i32
    %c0_i32_0 = arith.constant 0 : i32
    %c0_i32_1 = arith.constant 0 : i32
    return %c0_i32, %c0_i32_0 : i32, i32
  }
  func.func @transform_3(%arg0: i32) -> (i32, i32) {
    %c0_i32 = arith.constant 0 : i32
    %c0_i32_0 = arith.constant 0 : i32
    %c0_i32_1 = arith.constant 0 : i32
    return %c0_i32, %c0_i32_0 : i32, i32
  }
  func.func @transform_4(%arg0: i32) -> (i32, i32) {
    %c0_i32 = arith.constant 0 : i32
    %c0_i32_0 = arith.constant 0 : i32
    %c0_i32_1 = arith.constant 0 : i32
    return %c0_i32, %c0_i32_0 : i32, i32
  }
  func.func @transform_5(%arg0: i32) -> (i32, i32) {
    %c0_i32 = arith.constant 0 : i32
    %c0_i32_0 = arith.constant 0 : i32
    return %c0_i32, %arg0 : i32, i32
  }
  func.func @transform_6(%arg0: i32) -> (i32, i32) {
    %c0_i32 = arith.constant 0 : i32
    %c0_i32_0 = arith.constant 0 : i32
    return %c0_i32, %arg0 : i32, i32
  }
  func.func @transform_7(%arg0: i32) -> (i32, i32) {
    %c0_i32 = arith.constant 0 : i32
    %c0_i32_0 = arith.constant 0 : i32
    return %c0_i32, %arg0 : i32, i32
  }
}

</mosaic_0001>

<llo_original>
// kernel: tpu_custom_call.1
$region0: #{tpu_custom_call.1}
  #allocation0 [shape = 'u32[]', space=smem, size = 0x4, offset = 0x4, fixed_abs, tag = 'smem constant byte address 0x4 - core index']
  #allocation1 [shape = 'u32[144,128]{1,0:T(1,128)}', space=vmem, size = 0x12000, scoped, tag = 'internal scratch']
  %s0 = inlined_call_operand.hbm [shape: f32[16,32], index: 0, kind: input, shape index: {}]
  %s1 = inlined_call_operand.hbm [shape: bf16[32,256], index: 1, kind: input, shape index: {}]
  %s2 = inlined_call_operand.vmem [shape: f32[1,256], index: 2, kind: input, shape index: {}]
  %s3 = inlined_call_operand.hbm [shape: bf16[256,512], index: 3, kind: input, shape index: {}]
  %s4 = inlined_call_operand.vmem [shape: f32[1,512], index: 4, kind: input, shape index: {}]
  %s5 = inlined_call_operand.hbm [shape: bf16[512,256], index: 5, kind: input, shape index: {}]
  %s6 = inlined_call_operand.vmem [shape: f32[1,256], index: 6, kind: input, shape index: {}]
  %s7 = inlined_call_operand.hbm [shape: bf16[16,256], index: 7, kind: output, shape index: {}]
  %s8 = sld [smem:[#allocation0]]
  $region54: #{tpu_custom_call.1} parent=0
    _
  %s10 = ssub.s32 1, %s8
  %s11 = scalar_select 0, %s10, %s8
  $region1: #{tpu_custom_call.1} parent=0
    #allocation2 [shape = 'u8[8192]{0}', space=vmem, size = 0x2000, scoped, tag = 'input window, operand 0, single buffered']
    #allocation3 [shape = 's32[1]{0}', space=sflag, size = 0x4, scoped, tag = 'scoped memory for tpu_custom_call.1']
    #allocation4 [shape = 's32[1]{0}', space=sflag, size = 0x4, scoped, tag = 'scoped memory for tpu_custom_call.1']
    #allocation5 [shape = 'u8[16384]{0}', space=vmem, size = 0x4000, scoped, tag = 'input window, operand 1, single buffered']
    #allocation6 [shape = 's32[1]{0}', space=sflag, size = 0x4, scoped, tag = 'scoped memory for tpu_custom_call.1']
    #allocation7 [shape = 'u8[262144]{0}', space=vmem, size = 0x40000, scoped, tag = 'input window, operand 3, single buffered']
    #allocation8 [shape = 'u8[262144]{0}', space=vmem, size = 0x40000, scoped, tag = 'input window, operand 5, single buffered']
    #allocation9 [shape = 's32[1]{0}', space=sflag, size = 0x4, scoped, tag = 'scoped memory for tpu_custom_call.1']
    #allocation10 [shape = 'u8[8192]{0}', space=vmem, size = 0x2000, scoped, tag = 'output window, operand 0, single buffered']
    %12 = vsyncpa [#allocation3], 0
    %13 = vsyncpa [#allocation6], 0
    %14 = vsyncpa [#allocation9], 0
    %15 = vsyncpa [#allocation4], 0
    // Predicated region
    $region2: #{tpu_custom_call.1} parent=1 // pred_check
      _
    $region3: #{tpu_custom_call.1} parent=1 // pred_check_branch
      %17 = sbr.rel (0) target = $region5
    $region4: #{tpu_custom_call.1} parent=1 // pred_region
      %s19 = ssub.s32 256, 256
      %20 = vsyncadd [#allocation3], %s19
      %s21 = sshll.u32 [#allocation2], 4
      %s22 = int_to_ptr.vmem [resolvable:$true] %s21
      %27 = dma.hbm_to_vmem [thread:$0]  %s0, 256, %s22, [#allocation3], 128, 128, 8
    $region5: #{tpu_custom_call.1} parent=1 // pred_fallthru
      _
    // Predicated region
    $region6: #{tpu_custom_call.1} parent=1 // pred_check
      _
    $region7: #{tpu_custom_call.1} parent=1 // pred_check_branch
      %29 = sbr.rel (0) target = $region9
    $region8: #{tpu_custom_call.1} parent=1 // pred_region
      %s31 = ssub.s32 512, 512
      %32 = vsyncadd [#allocation6], %s31
      %s33 = sshll.u32 [#allocation5], 4
      %s34 = int_to_ptr.vmem [resolvable:$true] %s33
      %39 = dma.hbm_to_vmem [thread:$0]  %s1, 512, %s34, [#allocation6], 128, 128, 8
    $region9: #{tpu_custom_call.1} parent=1 // pred_fallthru
      _
    // Predicated region
    $region10: #{tpu_custom_call.1} parent=1 // pred_check
      _
    $region11: #{tpu_custom_call.1} parent=1 // pred_check_branch
      %41 = sbr.rel (0) target = $region13
    $region12: #{tpu_custom_call.1} parent=1 // pred_region
      _
    $region13: #{tpu_custom_call.1} parent=1 // pred_fallthru
      _
    // Predicated region
    $region14: #{tpu_custom_call.1} parent=1 // pred_check
      _
    $region15: #{tpu_custom_call.1} parent=1 // pred_check_branch
      %43 = sbr.rel (0) target = $region17
    $region16: #{tpu_custom_call.1} parent=1 // pred_region
      %s45 = ssub.s32 8192, 8192
      %46 = vsyncadd [#allocation6], %s45
      %s47 = sshll.u32 [#allocation7], 4
      %s48 = int_to_ptr.vmem [resolvable:$true] %s47
      %53 = dma.hbm_to_vmem [thread:$0]  %s3, 8192, %s48, [#allocation6], 256, 256, 16
    $region17: #{tpu_custom_call.1} parent=1 // pred_fallthru
      _
    // Predicated region
    $region18: #{tpu_custom_call.1} parent=1 // pred_check
      _
    $region19: #{tpu_custom_call.1} parent=1 // pred_check_branch
      %55 = sbr.rel (0) target = $region21
    $region20: #{tpu_custom_call.1} parent=1 // pred_region
      _
    $region21: #{tpu_custom_call.1} parent=1 // pred_fallthru
      _
    // Predicated region
    $region22: #{tpu_custom_call.1} parent=1 // pred_check
      _
    $region23: #{tpu_custom_call.1} parent=1 // pred_check_branch
      %57 = sbr.rel (0) target = $region25
    $region24: #{tpu_custom_call.1} parent=1 // pred_region
      %s59 = ssub.s32 8192, 8192
      %60 = vsyncadd [#allocation9], %s59
      %s61 = sshll.u32 [#allocation8], 4
      %s62 = int_to_ptr.vmem [resolvable:$true] %s61
      %67 = dma.hbm_to_vmem [thread:$0]  %s5, 8192, %s62, [#allocation9], 128, 128, 8
    $region25: #{tpu_custom_call.1} parent=1 // pred_fallthru
      _
    // Predicated region
    $region26: #{tpu_custom_call.1} parent=1 // pred_check
      _
    $region27: #{tpu_custom_call.1} parent=1 // pred_check_branch
      %69 = sbr.rel (0) target = $region29
    $region28: #{tpu_custom_call.1} parent=1 // pred_region
      _
    $region29: #{tpu_custom_call.1} parent=1 // pred_fallthru
      _
    // Predicated region
    $region30: #{tpu_custom_call.1} parent=1 // pred_check
      _
    $region31: #{tpu_custom_call.1} parent=1 // pred_check_branch
      %71 = sbr.rel (0) target = $region33
    $region32: #{tpu_custom_call.1} parent=1 // pred_region
      %72 = dma.done [#allocation3], 256
    $region33: #{tpu_custom_call.1} parent=1 // pred_fallthru
      _
    // Predicated region
    $region34: #{tpu_custom_call.1} parent=1 // pred_check
      _
    $region35: #{tpu_custom_call.1} parent=1 // pred_check_branch
      %74 = sbr.rel (0) target = $region37
    $region36: #{tpu_custom_call.1} parent=1 // pred_region
      %75 = dma.done [#allocation6], 512
    $region37: #{tpu_custom_call.1} parent=1 // pred_fallthru
      _
    // Predicated region
    $region38: #{tpu_custom_call.1} parent=1 // pred_check
      _
    $region39: #{tpu_custom_call.1} parent=1 // pred_check_branch
      %77 = sbr.rel (0) target = $region41
    $region40: #{tpu_custom_call.1} parent=1 // pred_region
      %78 = dma.done [#allocation6], 8192
    $region41: #{tpu_custom_call.1} parent=1 // pred_fallthru
      _
    // Predicated region
    $region42: #{tpu_custom_call.1} parent=1 // pred_check
      _
    $region43: #{tpu_custom_call.1} parent=1 // pred_check_branch
      %80 = sbr.rel (0) target = $region45
    $region44: #{tpu_custom_call.1} parent=1 // pred_region
      %81 = dma.done [#allocation9], 8192
    $region45: #{tpu_custom_call.1} parent=1 // pred_fallthru
      _
    %v83 = vld [vmem:[#allocation2] sm:$0xff]
    %v84 = vld [vmem:[#allocation2 + $0x8] sm:$0xff]
    %v85 = vpack.c.bf16 %v84, %v83
    %v86 = vld [vmem:[#allocation5] sm:$0xff]
    %v87 = vld [vmem:[#allocation5 + $0x8] sm:$0xff]
    %v88 = vld [vmem:[#allocation5 + $0x10] sm:$0xff]
    %v89 = vld [vmem:[#allocation5 + $0x18] sm:$0xff]
    %v90 = vld [vmem:[%s2] sm:$0x3]
    %v92 = vlaneseq
    %v93 = vshrl.u32 %v92, 7
    %v94 = vsub.s32 0, %v93
    %v95 = vrot.slane %v90, %v94
    %v96 = vlaneseq
    %v97 = vshrl.u32 %v96, 7
    %v98 = vsub.s32 1, %v97
    %v99 = vrot.slane %v90, %v98
    %v106 = vunpack.c.l.b16 %v86
    %v107 = vunpack.c.h.b16 %v86
    %v108 = vunpack.c.l.b16 %v87
    %v109 = vunpack.c.h.b16 %v87
    %v110 = vunpack.c.l.b16 %v88
    %v111 = vunpack.c.h.b16 %v88
    %v112 = vunpack.c.l.b16 %v89
    %v113 = vunpack.c.h.b16 %v89
    %v114 = vpack.c.b16 %v108, %v106
    %v115 = vpack.c.b16 %v109, %v107
    %v116 = vpack.c.b16 %v112, %v110
    %v117 = vpack.c.b16 %v113, %v111
    %vm122 = vcmask 261120
    %v124 = vsel %vm122, %v85, 0
    %126 = vmatprep.subr.bf16.mxu0 %v115
    %127 = vmatpush1.bf16.msra.mxu0 %v114
    %128 = vmatprep.subr.bf16.mxu0 %v117
    %129 = vmatpush1.bf16.msra.mxu0 %v116
    %130 = vmatprep.subr.bf16.mxu0 0
    %131 = vmatpush1.bf16.msra.mxu0 0
    %132 = vmatprep.subr.bf16.mxu0 0
    %133 = vmatpush1.bf16.msra.mxu0 0
    %134 = vmatprep.subr.bf16.mxu0 0
    %135 = vmatpush1.bf16.msra.mxu0 0
    %136 = vmatprep.subr.bf16.mxu0 0
    %137 = vmatpush1.bf16.msra.mxu0 0
    %138 = vmatprep.subr.bf16.mxu0 0
    %139 = vmatpush1.bf16.msra.mxu0 0
    %140 = vmatprep.subr.bf16.mxu0 0
    %141 = vmatpush1.bf16.msra.mxu0 0
    %142 = vmatprep.subr.bf16.mxu0 0
    %143 = vmatpush1.bf16.msra.mxu0 0
    %144 = vmatprep.subr.bf16.mxu0 0
    %145 = vmatpush1.bf16.msra.mxu0 0
    %146 = vmatprep.subr.bf16.mxu0 0
    %147 = vmatpush1.bf16.msra.mxu0 0
    %148 = vmatprep.subr.bf16.mxu0 0
    %149 = vmatpush1.bf16.msra.mxu0 0
    %150 = vmatprep.subr.bf16.mxu0 0
    %151 = vmatpush1.bf16.msra.mxu0 0
    %152 = vmatprep.subr.bf16.mxu0 0
    %153 = vmatpush1.bf16.msra.mxu0 0
    %154 = vmatprep.subr.bf16.mxu0 0
    %155 = vmatpush1.bf16.msra.mxu0 0
    %156 = vmatprep.subr.bf16.mxu0 0
    %157 = vmatpush1.bf16.msra.mxu0 0
    %158 = vmatprep.mubr.bf16.mxu0 0
    %159 = vmatmul.mubr.bf16.gmra.mrb[0].mxu0 %v124
    %v160 = vpop.f32.mrb[0].mxu0
    %v161 = vadd.f32 %v95, %v160
    %v162 = vpop.f32.mrb[0].mxu0
    %v163 = vadd.f32 %v99, %v162
    %v164 = vpop.f32.mrb[0].mxu0
    %v165 = vadd.f32 %v95, %v164
    %v166 = vpop.f32.mrb[0].mxu0
    %v167 = vadd.f32 %v99, %v166
    %168 = vdwg.mxu0
    %v169 = vmax.f32 %v161, 0.0
    %v170 = vmax.f32 %v163, 0.0
    %v171 = vmax.f32 %v165, 0.0
    %v172 = vmax.f32 %v167, 0.0
    %v173 = vpack.c.bf16 %v171, %v169
    %v174 = vpack.c.bf16 %v172, %v170
    %v175 = vld [vmem:[#allocation7] sm:$0xff]
    %v176 = vld [vmem:[#allocation7 + $0x8] sm:$0xff]
    %v177 = vld [vmem:[#allocation7 + $0x10] sm:$0xff]
    %v178 = vld [vmem:[#allocation7 + $0x18] sm:$0xff]
    %v179 = vld [vmem:[#allocation7 + $0x20] sm:$0xff]
    %v180 = vld [vmem:[#allocation7 + $0x28] sm:$0xff]
    %v181 = vld [vmem:[#allocation7 + $0x30] sm:$0xff]
    %v182 = vld [vmem:[#allocation7 + $0x38] sm:$0xff]
    %v183 = vld [vmem:[#allocation7 + $0x40] sm:$0xff]
    %v184 = vld [vmem:[#allocation7 + $0x48] sm:$0xff]
    %v185 = vld [vmem:[#allocation7 + $0x50] sm:$0xff]
    %v186 = vld [vmem:[#allocation7 + $0x58] sm:$0xff]
    %v187 = vld [vmem:[#allocation7 + $0x60] sm:$0xff]
    %v188 = vld [vmem:[#allocation7 + $0x68] sm:$0xff]
    %v189 = vld [vmem:[#allocation7 + $0x70] sm:$0xff]
    %v190 = vld [vmem:[#allocation7 + $0x78] sm:$0xff]
    %v191 = vld [vmem:[#allocation7 + $0x80] sm:$0xff]
    %v192 = vld [vmem:[#allocation7 + $0x88] sm:$0xff]
    %v193 = vld [vmem:[#allocation7 + $0x90] sm:$0xff]
    %v194 = vld [vmem:[#allocation7 + $0x98] sm:$0xff]
    %v195 = vld [vmem:[#allocation7 + $0xa0] sm:$0xff]
    %v196 = vld [vmem:[#allocation7 + $0xa8] sm:$0xff]
    %v197 = vld [vmem:[#allocation7 + $0xb0] sm:$0xff]
    %v198 = vld [vmem:[#allocation7 + $0xb8] sm:$0xff]
    %v199 = vld [vmem:[#allocation7 + $0xc0] sm:$0xff]
    %v200 = vld [vmem:[#allocation7 + $0xc8] sm:$0xff]
    %v201 = vld [vmem:[#allocation7 + $0xd0] sm:$0xff]
    %v202 = vld [vmem:[#allocation7 + $0xd8] sm:$0xff]
    %v203 = vld [vmem:[#allocation7 + $0xe0] sm:$0xff]
    %v204 = vld [vmem:[#allocation7 + $0xe8] sm:$0xff]
    %v205 = vld [vmem:[#allocation7 + $0xf0] sm:$0xff]
    %v206 = vld [vmem:[#allocation7 + $0xf8] sm:$0xff]
    %v207 = vld [vmem:[#allocation7 + $0x100] sm:$0xff]
    %v208 = vld [vmem:[#allocation7 + $0x108] sm:$0xff]
    %v209 = vld [vmem:[#allocation7 + $0x110] sm:$0xff]
    %v210 = vld [vmem:[#allocation7 + $0x118] sm:$0xff]
    %v211 = vld [vmem:[#allocation7 + $0x120] sm:$0xff]
    %v212 = vld [vmem:[#allocation7 + $0x128] sm:$0xff]
    %v213 = vld [vmem:[#allocation7 + $0x130] sm:$0xff]
    %v214 = vld [vmem:[#allocation7 + $0x138] sm:$0xff]
    %v215 = vld [vmem:[#allocation7 + $0x140] sm:$0xff]
    %v216 = vld [vmem:[#allocation7 + $0x148] sm:$0xff]
    %v217 = vld [vmem:[#allocation7 + $0x150] sm:$0xff]
    %v218 = vld [vmem:[#allocation7 + $0x158] sm:$0xff]
    %v219 = vld [vmem:[#allocation7 + $0x160] sm:$0xff]
    %v220 = vld [vmem:[#allocation7 + $0x168] sm:$0xff]
    %v221 = vld [vmem:[#allocation7 + $0x170] sm:$0xff]
    %v222 = vld [vmem:[#allocation7 + $0x178] sm:$0xff]
    %v223 = vld [vmem:[#allocation7 + $0x180] sm:$0xff]
    %v224 = vld [vmem:[#allocation7 + $0x188] sm:$0xff]
    %v225 = vld [vmem:[#allocation7 + $0x190] sm:$0xff]
    %v226 = vld [vmem:[#allocation7 + $0x198] sm:$0xff]
    %v227 = vld [vmem:[#allocation7 + $0x1a0] sm:$0xff]
    %v228 = vld [vmem:[#allocation7 + $0x1a8] sm:$0xff]
    %v229 = vld [vmem:[#allocation7 + $0x1b0] sm:$0xff]
    %v230 = vld [vmem:[#allocation7 + $0x1b8] sm:$0xff]
    %v231 = vld [vmem:[#allocation7 + $0x1c0] sm:$0xff]
    %v232 = vld [vmem:[#allocation7 + $0x1c8] sm:$0xff]
    %v233 = vld [vmem:[#allocation7 + $0x1d0] sm:$0xff]
    %v234 = vld [vmem:[#allocation7 + $0x1d8] sm:$0xff]
    %v235 = vld [vmem:[#allocation7 + $0x1e0] sm:$0xff]
    %v236 = vld [vmem:[#allocation7 + $0x1e8] sm:$0xff]
    %v237 = vld [vmem:[#allocation7 + $0x1f0] sm:$0xff]
    %v238 = vld [vmem:[#allocation7 + $0x1f8] sm:$0xff]
    %v239 = vld [vmem:[%s4] sm:$0xf]
    %v241 = vlaneseq
    %v242 = vshrl.u32 %v241, 7
    %v243 = vsub.s32 0, %v242
    %v244 = vrot.slane %v239, %v243
    %v245 = vlaneseq
    %v246 = vshrl.u32 %v245, 7
    %v247 = vsub.s32 1, %v246
    %v248 = vrot.slane %v239, %v247
    %v249 = vlaneseq
    %v250 = vshrl.u32 %v249, 7
    %v251 = vsub.s32 2, %v250
    %v252 = vrot.slane %v239, %v251
    %v253 = vlaneseq
    %v254 = vshrl.u32 %v253, 7
    %v255 = vsub.s32 3, %v254
    %v256 = vrot.slane %v239, %v255
    %v325 = vunpack.c.l.b16 %v175
    %v326 = vunpack.c.h.b16 %v175
    %v327 = vunpack.c.l.b16 %v176
    %v328 = vunpack.c.h.b16 %v176
    %v329 = vunpack.c.l.b16 %v177
    %v330 = vunpack.c.h.b16 %v177
    %v331 = vunpack.c.l.b16 %v178
    %v332 = vunpack.c.h.b16 %v178
    %v333 = vunpack.c.l.b16 %v179
    %v334 = vunpack.c.h.b16 %v179
    %v335 = vunpack.c.l.b16 %v180
    %v336 = vunpack.c.h.b16 %v180
    %v337 = vunpack.c.l.b16 %v181
    %v338 = vunpack.c.h.b16 %v181
    %v339 = vunpack.c.l.b16 %v182
    %v340 = vunpack.c.h.b16 %v182
    %v341 = vunpack.c.l.b16 %v183
    %v342 = vunpack.c.h.b16 %v183
    %v343 = vunpack.c.l.b16 %v184
    %v344 = vunpack.c.h.b16 %v184
    %v345 = vunpack.c.l.b16 %v185
    %v346 = vunpack.c.h.b16 %v185
    %v347 = vunpack.c.l.b16 %v186
    %v348 = vunpack.c.h.b16 %v186
    %v349 = vunpack.c.l.b16 %v187
    %v350 = vunpack.c.h.b16 %v187
    %v351 = vunpack.c.l.b16 %v188
    %v352 = vunpack.c.h.b16 %v188
    %v353 = vunpack.c.l.b16 %v189
    %v354 = vunpack.c.h.b16 %v189
    %v355 = vunpack.c.l.b16 %v190
    %v356 = vunpack.c.h.b16 %v190
    %v357 = vunpack.c.l.b16 %v191
    %v358 = vunpack.c.h.b16 %v191
    %v359 = vunpack.c.l.b16 %v192
    %v360 = vunpack.c.h.b16 %v192
    %v361 = vunpack.c.l.b16 %v193
    %v362 = vunpack.c.h.b16 %v193
    %v363 = vunpack.c.l.b16 %v194
    %v364 = vunpack.c.h.b16 %v194
    %v365 = vunpack.c.l.b16 %v195
    %v366 = vunpack.c.h.b16 %v195
    %v367 = vunpack.c.l.b16 %v196
    %v368 = vunpack.c.h.b16 %v196
    %v369 = vunpack.c.l.b16 %v197
    %v370 = vunpack.c.h.b16 %v197
    %v371 = vunpack.c.l.b16 %v198
    %v372 = vunpack.c.h.b16 %v198
    %v373 = vunpack.c.l.b16 %v199
    %v374 = vunpack.c.h.b16 %v199
    %v375 = vunpack.c.l.b16 %v200
    %v376 = vunpack.c.h.b16 %v200
    %v377 = vunpack.c.l.b16 %v201
    %v378 = vunpack.c.h.b16 %v201
    %v379 = vunpack.c.l.b16 %v202
    %v380 = vunpack.c.h.b16 %v202
    %v381 = vunpack.c.l.b16 %v203
    %v382 = vunpack.c.h.b16 %v203
    %v383 = vunpack.c.l.b16 %v204
    %v384 = vunpack.c.h.b16 %v204
    %v385 = vunpack.c.l.b16 %v205
    %v386 = vunpack.c.h.b16 %v205
    %v387 = vunpack.c.l.b16 %v206
    %v388 = vunpack.c.h.b16 %v206
    %v389 = vunpack.c.l.b16 %v207
    %v390 = vunpack.c.h.b16 %v207
    %v391 = vunpack.c.l.b16 %v208
    %v392 = vunpack.c.h.b16 %v208
    %v393 = vunpack.c.l.b16 %v209
    %v394 = vunpack.c.h.b16 %v209
    %v395 = vunpack.c.l.b16 %v210
    %v396 = vunpack.c.h.b16 %v210
    %v397 = vunpack.c.l.b16 %v211
    %v398 = vunpack.c.h.b16 %v211
    %v399 = vunpack.c.l.b16 %v212
    %v400 = vunpack.c.h.b16 %v212
    %v401 = vunpack.c.l.b16 %v213
    %v402 = vunpack.c.h.b16 %v213
    %v403 = vunpack.c.l.b16 %v214
    %v404 = vunpack.c.h.b16 %v214
    %v405 = vunpack.c.l.b16 %v215
    %v406 = vunpack.c.h.b16 %v215
    %v407 = vunpack.c.l.b16 %v216
    %v408 = vunpack.c.h.b16 %v216
    %v409 = vunpack.c.l.b16 %v217
    %v410 = vunpack.c.h.b16 %v217
    %v411 = vunpack.c.l.b16 %v218
    %v412 = vunpack.c.h.b16 %v218
    %v413 = vunpack.c.l.b16 %v219
    %v414 = vunpack.c.h.b16 %v219
    %v415 = vunpack.c.l.b16 %v220
    %v416 = vunpack.c.h.b16 %v220
    %v417 = vunpack.c.l.b16 %v221
    %v418 = vunpack.c.h.b16 %v221
    %v419 = vunpack.c.l.b16 %v222
    %v420 = vunpack.c.h.b16 %v222
    %v421 = vunpack.c.l.b16 %v223
    %v422 = vunpack.c.h.b16 %v223
    %v423 = vunpack.c.l.b16 %v224
    %v424 = vunpack.c.h.b16 %v224
    %v425 = vunpack.c.l.b16 %v225
    %v426 = vunpack.c.h.b16 %v225
    %v427 = vunpack.c.l.b16 %v226
    %v428 = vunpack.c.h.b16 %v226
    %v429 = vunpack.c.l.b16 %v227
    %v430 = vunpack.c.h.b16 %v227
    %v431 = vunpack.c.l.b16 %v228
    %v432 = vunpack.c.h.b16 %v228
    %v433 = vunpack.c.l.b16 %v229
    %v434 = vunpack.c.h.b16 %v229
    %v435 = vunpack.c.l.b16 %v230
    %v436 = vunpack.c.h.b16 %v230
    %v437 = vunpack.c.l.b16 %v231
    %v438 = vunpack.c.h.b16 %v231
    %v439 = vunpack.c.l.b16 %v232
    %v440 = vunpack.c.h.b16 %v232
    %v441 = vunpack.c.l.b16 %v233
    %v442 = vunpack.c.h.b16 %v233
    %v443 = vunpack.c.l.b16 %v234
    %v444 = vunpack.c.h.b16 %v234
    %v445 = vunpack.c.l.b16 %v235
    %v446 = vunpack.c.h.b16 %v235
    %v447 = vunpack.c.l.b16 %v236
    %v448 = vunpack.c.h.b16 %v236
    %v449 = vunpack.c.l.b16 %v237
    %v450 = vunpack.c.h.b16 %v237
    %v451 = vunpack.c.l.b16 %v238
    %v452 = vunpack.c.h.b16 %v238
    %v453 = vpack.c.b16 %v329, %v325
    %v454 = vpack.c.b16 %v330, %v326
    %v455 = vpack.c.b16 %v331, %v327
    %v456 = vpack.c.b16 %v332, %v328
    %v457 = vpack.c.b16 %v337, %v333
    %v458 = vpack.c.b16 %v338, %v334
    %v459 = vpack.c.b16 %v339, %v335
    %v460 = vpack.c.b16 %v340, %v336
    %v461 = vpack.c.b16 %v345, %v341
    %v462 = vpack.c.b16 %v346, %v342
    %v463 = vpack.c.b16 %v347, %v343
    %v464 = vpack.c.b16 %v348, %v344
    %v465 = vpack.c.b16 %v353, %v349
    %v466 = vpack.c.b16 %v354, %v350
    %v467 = vpack.c.b16 %v355, %v351
    %v468 = vpack.c.b16 %v356, %v352
    %v469 = vpack.c.b16 %v361, %v357
    %v470 = vpack.c.b16 %v362, %v358
    %v471 = vpack.c.b16 %v363, %v359
    %v472 = vpack.c.b16 %v364, %v360
    %v473 = vpack.c.b16 %v369, %v365
    %v474 = vpack.c.b16 %v370, %v366
    %v475 = vpack.c.b16 %v371, %v367
    %v476 = vpack.c.b16 %v372, %v368
    %v477 = vpack.c.b16 %v377, %v373
    %v478 = vpack.c.b16 %v378, %v374
    %v479 = vpack.c.b16 %v379, %v375
    %v480 = vpack.c.b16 %v380, %v376
    %v481 = vpack.c.b16 %v385, %v381
    %v482 = vpack.c.b16 %v386, %v382
    %v483 = vpack.c.b16 %v387, %v383
    %v484 = vpack.c.b16 %v388, %v384
    %v485 = vpack.c.b16 %v393, %v389
    %v486 = vpack.c.b16 %v394, %v390
    %v487 = vpack.c.b16 %v395, %v391
    %v488 = vpack.c.b16 %v396, %v392
    %v489 = vpack.c.b16 %v401, %v397
    %v490 = vpack.c.b16 %v402, %v398
    %v491 = vpack.c.b16 %v403, %v399
    %v492 = vpack.c.b16 %v404, %v400
    %v493 = vpack.c.b16 %v409, %v405
    %v494 = vpack.c.b16 %v410, %v406
    %v495 = vpack.c.b16 %v411, %v407
    %v496 = vpack.c.b16 %v412, %v408
    %v497 = vpack.c.b16 %v417, %v413
    %v498 = vpack.c.b16 %v418, %v414
    %v499 = vpack.c.b16 %v419, %v415
    %v500 = vpack.c.b16 %v420, %v416
    %v501 = vpack.c.b16 %v425, %v421
    %v502 = vpack.c.b16 %v426, %v422
    %v503 = vpack.c.b16 %v427, %v423
    %v504 = vpack.c.b16 %v428, %v424
    %v505 = vpack.c.b16 %v433, %v429
    %v506 = vpack.c.b16 %v434, %v430
    %v507 = vpack.c.b16 %v435, %v431
    %v508 = vpack.c.b16 %v436, %v432
    %v509 = vpack.c.b16 %v441, %v437
    %v510 = vpack.c.b16 %v442, %v438
    %v511 = vpack.c.b16 %v443, %v439
    %v512 = vpack.c.b16 %v444, %v440
    %v513 = vpack.c.b16 %v449, %v445
    %v514 = vpack.c.b16 %v450, %v446
    %v515 = vpack.c.b16 %v451, %v447
    %v516 = vpack.c.b16 %v452, %v448
    %581 = vmatprep.subr.bf16.mxu0 %v454
    %582 = vmatpush1.bf16.msra.mxu0 %v453
    %583 = vmatprep.subr.bf16.mxu0 %v458
    %584 = vmatpush1.bf16.msra.mxu0 %v457
    %585 = vmatprep.subr.bf16.mxu0 %v462
    %586 = vmatpush1.bf16.msra.mxu0 %v461
    %587 = vmatprep.subr.bf16.mxu0 %v466
    %588 = vmatpush1.bf16.msra.mxu0 %v465
    %589 = vmatprep.subr.bf16.mxu0 %v470
    %590 = vmatpush1.bf16.msra.mxu0 %v469
    %591 = vmatprep.subr.bf16.mxu0 %v474
    %592 = vmatpush1.bf16.msra.mxu0 %v473
    %593 = vmatprep.subr.bf16.mxu0 %v478
    %594 = vmatpush1.bf16.msra.mxu0 %v477
    %595 = vmatprep.subr.bf16.mxu0 %v482
    %596 = vmatpush1.bf16.msra.mxu0 %v481
    %597 = vmatprep.subr.bf16.mxu0 %v486
    %598 = vmatpush1.bf16.msra.mxu0 %v485
    %599 = vmatprep.subr.bf16.mxu0 %v490
    %600 = vmatpush1.bf16.msra.mxu0 %v489
    %601 = vmatprep.subr.bf16.mxu0 %v494
    %602 = vmatpush1.bf16.msra.mxu0 %v493
    %603 = vmatprep.subr.bf16.mxu0 %v498
    %604 = vmatpush1.bf16.msra.mxu0 %v497
    %605 = vmatprep.subr.bf16.mxu0 %v502
    %606 = vmatpush1.bf16.msra.mxu0 %v501
    %607 = vmatprep.subr.bf16.mxu0 %v506
    %608 = vmatpush1.bf16.msra.mxu0 %v505
    %609 = vmatprep.subr.bf16.mxu0 %v510
    %610 = vmatpush1.bf16.msra.mxu0 %v509
    %611 = vmatprep.subr.bf16.mxu0 %v514
    %612 = vmatpush1.bf16.msra.mxu0 %v513
    %613 = vmatprep.mubr.bf16.mxu0 %v174
    %614 = vmatmul.mubr.bf16.gmra.mrb[0].mxu0 %v173
    %v615 = vpop.f32.mrb[0].mxu0
    %v616 = vadd.f32 %v244, %v615
    %v617 = vpop.f32.mrb[0].mxu0
    %v618 = vadd.f32 %v248, %v617
    %v619 = vpop.f32.mrb[0].mxu0
    %v620 = vadd.f32 %v244, %v619
    %v621 = vpop.f32.mrb[0].mxu0
    %v622 = vadd.f32 %v248, %v621
    %623 = vdwg.mxu0
    %624 = vmatprep.subr.bf16.mxu0 %v456
    %625 = vmatpush1.bf16.msra.mxu0 %v455
    %626 = vmatprep.subr.bf16.mxu0 %v460
    %627 = vmatpush1.bf16.msra.mxu0 %v459
    %628 = vmatprep.subr.bf16.mxu0 %v464
    %629 = vmatpush1.bf16.msra.mxu0 %v463
    %630 = vmatprep.subr.bf16.mxu0 %v468
    %631 = vmatpush1.bf16.msra.mxu0 %v467
    %632 = vmatprep.subr.bf16.mxu0 %v472
    %633 = vmatpush1.bf16.msra.mxu0 %v471
    %634 = vmatprep.subr.bf16.mxu0 %v476
    %635 = vmatpush1.bf16.msra.mxu0 %v475
    %636 = vmatprep.subr.bf16.mxu0 %v480
    %637 = vmatpush1.bf16.msra.mxu0 %v479
    %638 = vmatprep.subr.bf16.mxu0 %v484
    %639 = vmatpush1.bf16.msra.mxu0 %v483
    %640 = vmatprep.subr.bf16.mxu0 %v488
    %641 = vmatpush1.bf16.msra.mxu0 %v487
    %642 = vmatprep.subr.bf16.mxu0 %v492
    %643 = vmatpush1.bf16.msra.mxu0 %v491
    %644 = vmatprep.subr.bf16.mxu0 %v496
    %645 = vmatpush1.bf16.msra.mxu0 %v495
    %646 = vmatprep.subr.bf16.mxu0 %v500
    %647 = vmatpush1.bf16.msra.mxu0 %v499
    %648 = vmatprep.subr.bf16.mxu0 %v504
    %649 = vmatpush1.bf16.msra.mxu0 %v503
    %650 = vmatprep.subr.bf16.mxu0 %v508
    %651 = vmatpush1.bf16.msra.mxu0 %v507
    %652 = vmatprep.subr.bf16.mxu0 %v512
    %653 = vmatpush1.bf16.msra.mxu0 %v511
    %654 = vmatprep.subr.bf16.mxu0 %v516
    %655 = vmatpush1.bf16.msra.mxu0 %v515
    %656 = vmatprep.mubr.bf16.mxu0 %v174
    %657 = vmatmul.mubr.bf16.gmra.mrb[0].mxu0 %v173
    %v658 = vpop.f32.mrb[0].mxu0
    %v659 = vadd.f32 %v252, %v658
    %v660 = vpop.f32.mrb[0].mxu0
    %v661 = vadd.f32 %v256, %v660
    %v662 = vpop.f32.mrb[0].mxu0
    %v663 = vadd.f32 %v252, %v662
    %v664 = vpop.f32.mrb[0].mxu0
    %v665 = vadd.f32 %v256, %v664
    %666 = vdwg.mxu0
    %v667 = vmax.f32 %v616, 0.0
    %v668 = vmax.f32 %v618, 0.0
    %v669 = vmax.f32 %v659, 0.0
    %v670 = vmax.f32 %v661, 0.0
    %v671 = vmax.f32 %v620, 0.0
    %v672 = vmax.f32 %v622, 0.0
    %v673 = vmax.f32 %v663, 0.0
    %v674 = vmax.f32 %v665, 0.0
    %v675 = vpack.c.bf16 %v671, %v667
    %v676 = vpack.c.bf16 %v672, %v668
    %v677 = vpack.c.bf16 %v673, %v669
    %v678 = vpack.c.bf16 %v674, %v670
    %v679 = vld [vmem:[#allocation8] sm:$0xff]
    %v680 = vld [vmem:[#allocation8 + $0x8] sm:$0xff]
    %v681 = vld [vmem:[#allocation8 + $0x10] sm:$0xff]
    %v682 = vld [vmem:[#allocation8 + $0x18] sm:$0xff]
    %v683 = vld [vmem:[#allocation8 + $0x20] sm:$0xff]
    %v684 = vld [vmem:[#allocation8 + $0x28] sm:$0xff]
    %v685 = vld [vmem:[#allocation8 + $0x30] sm:$0xff]
    %v686 = vld [vmem:[#allocation8 + $0x38] sm:$0xff]
    %v687 = vld [vmem:[#allocation8 + $0x40] sm:$0xff]
    %v688 = vld [vmem:[#allocation8 + $0x48] sm:$0xff]
    %v689 = vld [vmem:[#allocation8 + $0x50] sm:$0xff]
    %v690 = vld [vmem:[#allocation8 + $0x58] sm:$0xff]
    %v691 = vld [vmem:[#allocation8 + $0x60] sm:$0xff]
    %v692 = vld [vmem:[#allocation8 + $0x68] sm:$0xff]
    %v693 = vld [vmem:[#allocation8 + $0x70] sm:$0xff]
    %v694 = vld [vmem:[#allocation8 + $0x78] sm:$0xff]
    %v695 = vld [vmem:[#allocation8 + $0x80] sm:$0xff]
    %v696 = vld [vmem:[#allocation8 + $0x88] sm:$0xff]
    %v697 = vld [vmem:[#allocation8 + $0x90] sm:$0xff]
    %v698 = vld [vmem:[#allocation8 + $0x98] sm:$0xff]
    %v699 = vld [vmem:[#allocation8 + $0xa0] sm:$0xff]
    %v700 = vld [vmem:[#allocation8 + $0xa8] sm:$0xff]
    %v701 = vld [vmem:[#allocation8 + $0xb0] sm:$0xff]
    %v702 = vld [vmem:[#allocation8 + $0xb8] sm:$0xff]
    %v703 = vld [vmem:[#allocation8 + $0xc0] sm:$0xff]
    %v704 = vld [vmem:[#allocation8 + $0xc8] sm:$0xff]
    %v705 = vld [vmem:[#allocation8 + $0xd0] sm:$0xff]
    %v706 = vld [vmem:[#allocation8 + $0xd8] sm:$0xff]
    %v707 = vld [vmem:[#allocation8 + $0xe0] sm:$0xff]
    %v708 = vld [vmem:[#allocation8 + $0xe8] sm:$0xff]
    %v709 = vld [vmem:[#allocation8 + $0xf0] sm:$0xff]
    %v710 = vld [vmem:[#allocation8 + $0xf8] sm:$0xff]
    %v711 = vld [vmem:[#allocation8 + $0x100] sm:$0xff]
    %v712 = vld [vmem:[#allocation8 + $0x108] sm:$0xff]
    %v713 = vld [vmem:[#allocation8 + $0x110] sm:$0xff]
    %v714 = vld [vmem:[#allocation8 + $0x118] sm:$0xff]
    %v715 = vld [vmem:[#allocation8 + $0x120] sm:$0xff]
    %v716 = vld [vmem:[#allocation8 + $0x128] sm:$0xff]
    %v717 = vld [vmem:[#allocation8 + $0x130] sm:$0xff]
    %v718 = vld [vmem:[#allocation8 + $0x138] sm:$0xff]
    %v719 = vld [vmem:[#allocation8 + $0x140] sm:$0xff]
    %v720 = vld [vmem:[#allocation8 + $0x148] sm:$0xff]
    %v721 = vld [vmem:[#allocation8 + $0x150] sm:$0xff]
    %v722 = vld [vmem:[#allocation8 + $0x158] sm:$0xff]
    %v723 = vld [vmem:[#allocation8 + $0x160] sm:$0xff]
    %v724 = vld [vmem:[#allocation8 + $0x168] sm:$0xff]
    %v725 = vld [vmem:[#allocation8 + $0x170] sm:$0xff]
    %v726 = vld [vmem:[#allocation8 + $0x178] sm:$0xff]
    %v727 = vld [vmem:[#allocation8 + $0x180] sm:$0xff]
    %v728 = vld [vmem:[#allocation8 + $0x188] sm:$0xff]
    %v729 = vld [vmem:[#allocation8 + $0x190] sm:$0xff]
    %v730 = vld [vmem:[#allocation8 + $0x198] sm:$0xff]
    %v731 = vld [vmem:[#allocation8 + $0x1a0] sm:$0xff]
    %v732 = vld [vmem:[#allocation8 + $0x1a8] sm:$0xff]
    %v733 = vld [vmem:[#allocation8 + $0x1b0] sm:$0xff]
    %v734 = vld [vmem:[#allocation8 + $0x1b8] sm:$0xff]
    %v735 = vld [vmem:[#allocation8 + $0x1c0] sm:$0xff]
    %v736 = vld [vmem:[#allocation8 + $0x1c8] sm:$0xff]
    %v737 = vld [vmem:[#allocation8 + $0x1d0] sm:$0xff]
    %v738 = vld [vmem:[#allocation8 + $0x1d8] sm:$0xff]
    %v739 = vld [vmem:[#allocation8 + $0x1e0] sm:$0xff]
    %v740 = vld [vmem:[#allocation8 + $0x1e8] sm:$0xff]
    %v741 = vld [vmem:[#allocation8 + $0x1f0] sm:$0xff]
    %v742 = vld [vmem:[#allocation8 + $0x1f8] sm:$0xff]
    %v743 = vld [vmem:[%s6] sm:$0x3]
    %v745 = vlaneseq
    %v746 = vshrl.u32 %v745, 7
    %v747 = vsub.s32 0, %v746
    %v748 = vrot.slane %v743, %v747
    %v749 = vlaneseq
    %v750 = vshrl.u32 %v749, 7
    %v751 = vsub.s32 1, %v750
    %v752 = vrot.slane %v743, %v751
    %v819 = vunpack.c.l.b16 %v679
    %v820 = vunpack.c.h.b16 %v679
    %v821 = vunpack.c.l.b16 %v680
    %v822 = vunpack.c.h.b16 %v680
    %v823 = vunpack.c.l.b16 %v681
    %v824 = vunpack.c.h.b16 %v681
    %v825 = vunpack.c.l.b16 %v682
    %v826 = vunpack.c.h.b16 %v682
    %v827 = vunpack.c.l.b16 %v683
    %v828 = vunpack.c.h.b16 %v683
    %v829 = vunpack.c.l.b16 %v684
    %v830 = vunpack.c.h.b16 %v684
    %v831 = vunpack.c.l.b16 %v685
    %v832 = vunpack.c.h.b16 %v685
    %v833 = vunpack.c.l.b16 %v686
    %v834 = vunpack.c.h.b16 %v686
    %v835 = vunpack.c.l.b16 %v687
    %v836 = vunpack.c.h.b16 %v687
    %v837 = vunpack.c.l.b16 %v688
    %v838 = vunpack.c.h.b16 %v688
    %v839 = vunpack.c.l.b16 %v689
    %v840 = vunpack.c.h.b16 %v689
    %v841 = vunpack.c.l.b16 %v690
    %v842 = vunpack.c.h.b16 %v690
    %v843 = vunpack.c.l.b16 %v691
    %v844 = vunpack.c.h.b16 %v691
    %v845 = vunpack.c.l.b16 %v692
    %v846 = vunpack.c.h.b16 %v692
    %v847 = vunpack.c.l.b16 %v693
    %v848 = vunpack.c.h.b16 %v693
    %v849 = vunpack.c.l.b16 %v694
    %v850 = vunpack.c.h.b16 %v694
    %v851 = vunpack.c.l.b16 %v695
    %v852 = vunpack.c.h.b16 %v695
    %v853 = vunpack.c.l.b16 %v696
    %v854 = vunpack.c.h.b16 %v696
    %v855 = vunpack.c.l.b16 %v697
    %v856 = vunpack.c.h.b16 %v697
    %v857 = vunpack.c.l.b16 %v698
    %v858 = vunpack.c.h.b16 %v698
    %v859 = vunpack.c.l.b16 %v699
    %v860 = vunpack.c.h.b16 %v699
    %v861 = vunpack.c.l.b16 %v700
    %v862 = vunpack.c.h.b16 %v700
    %v863 = vunpack.c.l.b16 %v701
    %v864 = vunpack.c.h.b16 %v701
    %v865 = vunpack.c.l.b16 %v702
    %v866 = vunpack.c.h.b16 %v702
    %v867 = vunpack.c.l.b16 %v703
    %v868 = vunpack.c.h.b16 %v703
    %v869 = vunpack.c.l.b16 %v704
    %v870 = vunpack.c.h.b16 %v704
    %v871 = vunpack.c.l.b16 %v705
    %v872 = vunpack.c.h.b16 %v705
    %v873 = vunpack.c.l.b16 %v706
    %v874 = vunpack.c.h.b16 %v706
    %v875 = vunpack.c.l.b16 %v707
    %v876 = vunpack.c.h.b16 %v707
    %v877 = vunpack.c.l.b16 %v708
    %v878 = vunpack.c.h.b16 %v708
    %v879 = vunpack.c.l.b16 %v709
    %v880 = vunpack.c.h.b16 %v709
    %v881 = vunpack.c.l.b16 %v710
    %v882 = vunpack.c.h.b16 %v710
    %v883 = vunpack.c.l.b16 %v711
    %v884 = vunpack.c.h.b16 %v711
    %v885 = vunpack.c.l.b16 %v712
    %v886 = vunpack.c.h.b16 %v712
    %v887 = vunpack.c.l.b16 %v713
    %v888 = vunpack.c.h.b16 %v713
    %v889 = vunpack.c.l.b16 %v714
    %v890 = vunpack.c.h.b16 %v714
    %v891 = vunpack.c.l.b16 %v715
    %v892 = vunpack.c.h.b16 %v715
    %v893 = vunpack.c.l.b16 %v716
    %v894 = vunpack.c.h.b16 %v716
    %v895 = vunpack.c.l.b16 %v717
    %v896 = vunpack.c.h.b16 %v717
    %v897 = vunpack.c.l.b16 %v718
    %v898 = vunpack.c.h.b16 %v718
    %v899 = vunpack.c.l.b16 %v719
    %v900 = vunpack.c.h.b16 %v719
    %v901 = vunpack.c.l.b16 %v720
    %v902 = vunpack.c.h.b16 %v720
    %v903 = vunpack.c.l.b16 %v721
    %v904 = vunpack.c.h.b16 %v721
    %v905 = vunpack.c.l.b16 %v722
    %v906 = vunpack.c.h.b16 %v722
    %v907 = vunpack.c.l.b16 %v723
    %v908 = vunpack.c.h.b16 %v723
    %v909 = vunpack.c.l.b16 %v724
    %v910 = vunpack.c.h.b16 %v724
    %v911 = vunpack.c.l.b16 %v725
    %v912 = vunpack.c.h.b16 %v725
    %v913 = vunpack.c.l.b16 %v726
    %v914 = vunpack.c.h.b16 %v726
    %v915 = vunpack.c.l.b16 %v727
    %v916 = vunpack.c.h.b16 %v727
    %v917 = vunpack.c.l.b16 %v728
    %v918 = vunpack.c.h.b16 %v728
    %v919 = vunpack.c.l.b16 %v729
    %v920 = vunpack.c.h.b16 %v729
    %v921 = vunpack.c.l.b16 %v730
    %v922 = vunpack.c.h.b16 %v730
    %v923 = vunpack.c.l.b16 %v731
    %v924 = vunpack.c.h.b16 %v731
    %v925 = vunpack.c.l.b16 %v732
    %v926 = vunpack.c.h.b16 %v732
    %v927 = vunpack.c.l.b16 %v733
    %v928 = vunpack.c.h.b16 %v733
    %v929 = vunpack.c.l.b16 %v734
    %v930 = vunpack.c.h.b16 %v734
    %v931 = vunpack.c.l.b16 %v735
    %v932 = vunpack.c.h.b16 %v735
    %v933 = vunpack.c.l.b16 %v736
    %v934 = vunpack.c.h.b16 %v736
    %v935 = vunpack.c.l.b16 %v737
    %v936 = vunpack.c.h.b16 %v737
    %v937 = vunpack.c.l.b16 %v738
    %v938 = vunpack.c.h.b16 %v738
    %v939 = vunpack.c.l.b16 %v739
    %v940 = vunpack.c.h.b16 %v739
    %v941 = vunpack.c.l.b16 %v740
    %v942 = vunpack.c.h.b16 %v740
    %v943 = vunpack.c.l.b16 %v741
    %v944 = vunpack.c.h.b16 %v741
    %v945 = vunpack.c.l.b16 %v742
    %v946 = vunpack.c.h.b16 %v742
    %v947 = vpack.c.b16 %v821, %v819
    %v948 = vpack.c.b16 %v822, %v820
    %v949 = vpack.c.b16 %v825, %v823
    %v950 = vpack.c.b16 %v826, %v824
    %v951 = vpack.c.b16 %v829, %v827
    %v952 = vpack.c.b16 %v830, %v828
    %v953 = vpack.c.b16 %v833, %v831
    %v954 = vpack.c.b16 %v834, %v832
    %v955 = vpack.c.b16 %v837, %v835
    %v956 = vpack.c.b16 %v838, %v836
    %v957 = vpack.c.b16 %v841, %v839
    %v958 = vpack.c.b16 %v842, %v840
    %v959 = vpack.c.b16 %v845, %v843
    %v960 = vpack.c.b16 %v846, %v844
    %v961 = vpack.c.b16 %v849, %v847
    %v962 = vpack.c.b16 %v850, %v848
    %v963 = vpack.c.b16 %v853, %v851
    %v964 = vpack.c.b16 %v854, %v852
    %v965 = vpack.c.b16 %v857, %v855
    %v966 = vpack.c.b16 %v858, %v856
    %v967 = vpack.c.b16 %v861, %v859
    %v968 = vpack.c.b16 %v862, %v860
    %v969 = vpack.c.b16 %v865, %v863
    %v970 = vpack.c.b16 %v866, %v864
    %v971 = vpack.c.b16 %v869, %v867
    %v972 = vpack.c.b16 %v870, %v868
    %v973 = vpack.c.b16 %v873, %v871
    %v974 = vpack.c.b16 %v874, %v872
    %v975 = vpack.c.b16 %v877, %v875
    %v976 = vpack.c.b16 %v878, %v876
    %v977 = vpack.c.b16 %v881, %v879
    %v978 = vpack.c.b16 %v882, %v880
    %v979 = vpack.c.b16 %v885, %v883
    %v980 = vpack.c.b16 %v886, %v884
    %v981 = vpack.c.b16 %v889, %v887
    %v982 = vpack.c.b16 %v890, %v888
    %v983 = vpack.c.b16 %v893, %v891
    %v984 = vpack.c.b16 %v894, %v892
    %v985 = vpack.c.b16 %v897, %v895
    %v986 = vpack.c.b16 %v898, %v896
    %v987 = vpack.c.b16 %v901, %v899
    %v988 = vpack.c.b16 %v902, %v900
    %v989 = vpack.c.b16 %v905, %v903
    %v990 = vpack.c.b16 %v906, %v904
    %v991 = vpack.c.b16 %v909, %v907
    %v992 = vpack.c.b16 %v910, %v908
    %v993 = vpack.c.b16 %v913, %v911
    %v994 = vpack.c.b16 %v914, %v912
    %v995 = vpack.c.b16 %v917, %v915
    %v996 = vpack.c.b16 %v918, %v916
    %v997 = vpack.c.b16 %v921, %v919
    %v998 = vpack.c.b16 %v922, %v920
    %v999 = vpack.c.b16 %v925, %v923
    %v1000 = vpack.c.b16 %v926, %v924
    %v1001 = vpack.c.b16 %v929, %v927
    %v1002 = vpack.c.b16 %v930, %v928
    %v1003 = vpack.c.b16 %v933, %v931
    %v1004 = vpack.c.b16 %v934, %v932
    %v1005 = vpack.c.b16 %v937, %v935
    %v1006 = vpack.c.b16 %v938, %v936
    %v1007 = vpack.c.b16 %v941, %v939
    %v1008 = vpack.c.b16 %v942, %v940
    %v1009 = vpack.c.b16 %v945, %v943
    %v1010 = vpack.c.b16 %v946, %v944
    %1075 = vmatprep.subr.bf16.mxu0 %v948
    %1076 = vmatpush1.bf16.msra.mxu0 %v947
    %1077 = vmatprep.subr.bf16.mxu0 %v950
    %1078 = vmatpush1.bf16.msra.mxu0 %v949
    %1079 = vmatprep.subr.bf16.mxu0 %v952
    %1080 = vmatpush1.bf16.msra.mxu0 %v951
    %1081 = vmatprep.subr.bf16.mxu0 %v954
    %1082 = vmatpush1.bf16.msra.mxu0 %v953
    %1083 = vmatprep.subr.bf16.mxu0 %v956
    %1084 = vmatpush1.bf16.msra.mxu0 %v955
    %1085 = vmatprep.subr.bf16.mxu0 %v958
    %1086 = vmatpush1.bf16.msra.mxu0 %v957
    %1087 = vmatprep.subr.bf16.mxu0 %v960
    %1088 = vmatpush1.bf16.msra.mxu0 %v959
    %1089 = vmatprep.subr.bf16.mxu0 %v962
    %1090 = vmatpush1.bf16.msra.mxu0 %v961
    %1091 = vmatprep.subr.bf16.mxu0 %v964
    %1092 = vmatpush1.bf16.msra.mxu0 %v963
    %1093 = vmatprep.subr.bf16.mxu0 %v966
    %1094 = vmatpush1.bf16.msra.mxu0 %v965
    %1095 = vmatprep.subr.bf16.mxu0 %v968
    %1096 = vmatpush1.bf16.msra.mxu0 %v967
    %1097 = vmatprep.subr.bf16.mxu0 %v970
    %1098 = vmatpush1.bf16.msra.mxu0 %v969
    %1099 = vmatprep.subr.bf16.mxu0 %v972
    %1100 = vmatpush1.bf16.msra.mxu0 %v971
    %1101 = vmatprep.subr.bf16.mxu0 %v974
    %1102 = vmatpush1.bf16.msra.mxu0 %v973
    %1103 = vmatprep.subr.bf16.mxu0 %v976
    %1104 = vmatpush1.bf16.msra.mxu0 %v975
    %1105 = vmatprep.subr.bf16.mxu0 %v978
    %1106 = vmatpush1.bf16.msra.mxu0 %v977
    %1107 = vmatprep.mubr.bf16.mxu0 %v676
    %1108 = vmatmul.mubr.bf16.gmra.mrb[0].mxu0 %v675
    %v1109 = vpop.f32.mrb[0].mxu0
    %v1110 = vadd.f32 %v748, %v1109
    %v1111 = vpop.f32.mrb[0].mxu0
    %v1112 = vadd.f32 %v752, %v1111
    %v1113 = vpop.f32.mrb[0].mxu0
    %v1114 = vadd.f32 %v748, %v1113
    %v1115 = vpop.f32.mrb[0].mxu0
    %v1116 = vadd.f32 %v752, %v1115
    %1117 = vdwg.mxu0
    %1118 = vmatprep.subr.bf16.mxu0 %v980
    %1119 = vmatpush1.bf16.msra.mxu0 %v979
    %1120 = vmatprep.subr.bf16.mxu0 %v982
    %1121 = vmatpush1.bf16.msra.mxu0 %v981
    %1122 = vmatprep.subr.bf16.mxu0 %v984
    %1123 = vmatpush1.bf16.msra.mxu0 %v983
    %1124 = vmatprep.subr.bf16.mxu0 %v986
    %1125 = vmatpush1.bf16.msra.mxu0 %v985
    %1126 = vmatprep.subr.bf16.mxu0 %v988
    %1127 = vmatpush1.bf16.msra.mxu0 %v987
    %1128 = vmatprep.subr.bf16.mxu0 %v990
    %1129 = vmatpush1.bf16.msra.mxu0 %v989
    %1130 = vmatprep.subr.bf16.mxu0 %v992
    %1131 = vmatpush1.bf16.msra.mxu0 %v991
    %1132 = vmatprep.subr.bf16.mxu0 %v994
    %1133 = vmatpush1.bf16.msra.mxu0 %v993
    %1134 = vmatprep.subr.bf16.mxu0 %v996
    %1135 = vmatpush1.bf16.msra.mxu0 %v995
    %1136 = vmatprep.subr.bf16.mxu0 %v998
    %1137 = vmatpush1.bf16.msra.mxu0 %v997
    %1138 = vmatprep.subr.bf16.mxu0 %v1000
    %1139 = vmatpush1.bf16.msra.mxu0 %v999
    %1140 = vmatprep.subr.bf16.mxu0 %v1002
    %1141 = vmatpush1.bf16.msra.mxu0 %v1001
    %1142 = vmatprep.subr.bf16.mxu0 %v1004
    %1143 = vmatpush1.bf16.msra.mxu0 %v1003
    %1144 = vmatprep.subr.bf16.mxu0 %v1006
    %1145 = vmatpush1.bf16.msra.mxu0 %v1005
    %1146 = vmatprep.subr.bf16.mxu0 %v1008
    %1147 = vmatpush1.bf16.msra.mxu0 %v1007
    %1148 = vmatprep.subr.bf16.mxu0 %v1010
    %1149 = vmatpush1.bf16.msra.mxu0 %v1009
    %1150 = vmatprep.mubr.bf16.mxu0 %v678
    %1151 = vmatmul.mubr.bf16.gmra.mrb[0].mxu0 %v677
    %v1152 = vpop.f32.mrb[0].mxu0
    %v1153 = vadd.f32 %v1110, %v1152
    %v1154 = vpop.f32.mrb[0].mxu0
    %v1155 = vadd.f32 %v1112, %v1154
    %v1156 = vpop.f32.mrb[0].mxu0
    %v1157 = vadd.f32 %v1114, %v1156
    %v1158 = vpop.f32.mrb[0].mxu0
    %v1159 = vadd.f32 %v1116, %v1158
    %1160 = vdwg.mxu0
    %v1161 = vsub.f32 0.0, %v1153
    %v1162 = vsub.f32 0.0, %v1155
    %v1163 = vsub.f32 0.0, %v1157
    %v1164 = vsub.f32 0.0, %v1159
    %v1165 = vmul.f32 %v1161, 1.442695
    %v1166 = vpow.pop %v1165
    %v1167 = vmul.f32 %v1162, 1.442695
    %v1168 = vpow.pop %v1167
    %v1169 = vmul.f32 %v1163, 1.442695
    %v1170 = vpow.pop %v1169
    %v1171 = vmul.f32 %v1164, 1.442695
    %v1172 = vpow.pop %v1171
    %v1173 = vadd.f32 %v1166, 1.0
    %v1174 = vadd.f32 %v1168, 1.0
    %v1175 = vadd.f32 %v1170, 1.0
    %v1176 = vadd.f32 %v1172, 1.0
    %v1177 = vrcp.pop %v1173
    %v1178 = vrcp.pop %v1174
    %v1179 = vrcp.pop %v1175
    %v1180 = vrcp.pop %v1176
    %v1181 = vpack.c.bf16 %v1179, %v1177
    %v1182 = vpack.c.bf16 %v1180, %v1178
    %v1185 = vunpack.c.l.b16 %v1181
    %v1186 = vunpack.c.l.b16 %v1182
    %v1187 = vunpack.c.h.b16 %v1181
    %v1188 = vunpack.c.h.b16 %v1182
    %v1189 = vpack.c.b16 %v1186, %v1185
    %v1190 = vpack.c.b16 %v1188, %v1187
    %1193 = vst [vmem:[#allocation10] sm:$0xff] %v1189
    %1194 = vst [vmem:[#allocation10 + $0x8] sm:$0xff] %v1190
    // Predicated region
    $region46: #{tpu_custom_call.1} parent=1 // pred_check
      _
    $region47: #{tpu_custom_call.1} parent=1 // pred_check_branch
      %1196 = sbr.rel (0) target = $region49
    $region48: #{tpu_custom_call.1} parent=1 // pred_region
      %s1198 = ssub.s32 256, 256
      %1199 = vsyncadd [#allocation4], %s1198
      %s1200 = sshll.u32 [#allocation10], 4
      %s1201 = int_to_ptr.vmem [resolvable:$true] %s1200
      %1206 = dma.vmem_to_hbm [thread:$0]  %s1201, 256, %s7, [#allocation4], 128, 128, 8
    $region49: #{tpu_custom_call.1} parent=1 // pred_fallthru
      _
    // Predicated region
    $region50: #{tpu_custom_call.1} parent=1 // pred_check
      _
    $region51: #{tpu_custom_call.1} parent=1 // pred_check_branch
      %1208 = sbr.rel (0) target = $region53
    $region52: #{tpu_custom_call.1} parent=1 // pred_region
      %1209 = dma.done [#allocation4], 256
    $region53: #{tpu_custom_call.1} parent=1 // pred_fallthru
      _
    %1210 = vsyncpa [#allocation3], 1
    %1211 = vsyncpa [#allocation6], 1
    %1212 = vsyncpa [#allocation9], 1
    %1213 = vsyncpa [#allocation4], 1

// kernel: tpu_custom_call.1
$region0: #{tpu_custom_call.1}
  #allocation0 [shape = 'u32[]', space=smem, size = 0x4, offset = 0x4, fixed_abs, tag = 'smem constant byte address 0x4 - core index']
  #allocation1 [shape = 'u32[144,128]{1,0:T(1,128)}', space=vmem, size = 0x12000, scoped, tag = 'internal scratch']
  %s0 = inlined_call_operand.hbm [shape: f32[16,32], index: 0, kind: input, shape index: {}]
  %s1 = inlined_call_operand.hbm [shape: bf16[32,256], index: 1, kind: input, shape index: {}]
  %s2 = inlined_call_operand.vmem [shape: f32[1,256], index: 2, kind: input, shape index: {}]
  %s3 = inlined_call_operand.hbm [shape: bf16[256,512], index: 3, kind: input, shape index: {}]
  %s4 = inlined_call_operand.vmem [shape: f32[1,512], index: 4, kind: input, shape index: {}]
  %s5 = inlined_call_operand.hbm [shape: bf16[512,256], index: 5, kind: input, shape index: {}]
  %s6 = inlined_call_operand.vmem [shape: f32[1,256], index: 6, kind: input, shape index: {}]
  %s7 = inlined_call_operand.hbm [shape: bf16[16,256], index: 7, kind: output, shape index: {}]
  %s8 = sld [smem:[#allocation0]]
  $region54: #{tpu_custom_call.1} parent=0
    _
  %s10 = ssub.s32 1, %s8
  %s11 = scalar_select 0, %s10, %s8
  $region1: #{tpu_custom_call.1} parent=0
    #allocation2 [shape = 'u8[8192]{0}', space=vmem, size = 0x2000, scoped, tag = 'input window, operand 0, single buffered']
    #allocation3 [shape = 's32[1]{0}', space=sflag, size = 0x4, scoped, tag = 'scoped memory for tpu_custom_call.1']
    #allocation4 [shape = 's32[1]{0}', space=sflag, size = 0x4, scoped, tag = 'scoped memory for tpu_custom_call.1']
    #allocation5 [shape = 'u8[16384]{0}', space=vmem, size = 0x4000, scoped, tag = 'input window, operand 1, single buffered']
    #allocation6 [shape = 's32[1]{0}', space=sflag, size = 0x4, scoped, tag = 'scoped memory for tpu_custom_call.1']
    #allocation7 [shape = 'u8[262144]{0}', space=vmem, size = 0x40000, scoped, tag = 'input window, operand 3, single buffered']
    #allocation8 [shape = 'u8[262144]{0}', space=vmem, size = 0x40000, scoped, tag = 'input window, operand 5, single buffered']
    #allocation9 [shape = 's32[1]{0}', space=sflag, size = 0x4, scoped, tag = 'scoped memory for tpu_custom_call.1']
    #allocation10 [shape = 'u8[8192]{0}', space=vmem, size = 0x2000, scoped, tag = 'output window, operand 0, single buffered']
    %12 = vsyncpa [#allocation3], 0
    %13 = vsyncpa [#allocation6], 0
    %14 = vsyncpa [#allocation9], 0
    %15 = vsyncpa [#allocation4], 0
    // Predicated region
    $region2: #{tpu_custom_call.1} parent=1 // pred_check
      _
    $region3: #{tpu_custom_call.1} parent=1 // pred_check_branch
      %17 = sbr.rel (0) target = $region5
    $region4: #{tpu_custom_call.1} parent=1 // pred_region
      %s19 = ssub.s32 256, 256
      %20 = vsyncadd [#allocation3], %s19
      %s21 = sshll.u32 [#allocation2], 4
      %s22 = int_to_ptr.vmem [resolvable:$true] %s21
      %27 = dma.hbm_to_vmem [thread:$0]  %s0, 256, %s22, [#allocation3], 128, 128, 8
    $region5: #{tpu_custom_call.1} parent=1 // pred_fallthru
      _
    // Predicated region
    $region6: #{tpu_custom_call.1} parent=1 // pred_check
      _
    $region7: #{tpu_custom_call.1} parent=1 // pred_check_branch
      %29 = sbr.rel (0) target = $region9
    $region8: #{tpu_custom_call.1} parent=1 // pred_region
      %s31 = ssub.s32 512, 512
      %32 = vsyncadd [#allocation6], %s31
      %s33 = sshll.u32 [#allocation5], 4
      %s34 = int_to_ptr.vmem [resolvable:$true] %s33
      %39 = dma.hbm_to_vmem [thread:$0]  %s1, 512, %s34, [#allocation6], 128, 128, 8
    $region9: #{tpu_custom_call.1} parent=1 // pred_fallthru
      _
    // Predicated region
    $region10: #{tpu_custom_call.1} parent=1 // pred_check
      _
    $region11: #{tpu_custom_call.1} parent=1 // pred_check_branch
      %41 = sbr.rel (0) target = $region13
    $region12: #{tpu_custom_call.1} parent=1 // pred_region
      _
    $region13: #{tpu_custom_call.1} parent=1 // pred_fallthru
      _
    // Predicated region
    $region14: #{tpu_custom_call.1} parent=1 // pred_check
      _
    $region15: #{tpu_custom_call.1} parent=1 // pred_check_branch
      %43 = sbr.rel (0) target = $region17
    $region16: #{tpu_custom_call.1} parent=1 // pred_region
      %s45 = ssub.s32 8192, 8192
      %46 = vsyncadd [#allocation6], %s45
      %s47 = sshll.u32 [#allocation7], 4
      %s48 = int_to_ptr.vmem [resolvable:$true] %s47
      %53 = dma.hbm_to_vmem [thread:$0]  %s3, 8192, %s48, [#allocation6], 256, 256, 16
    $region17: #{tpu_custom_call.1} parent=1 // pred_fallthru
      _
    // Predicated region
    $region18: #{tpu_custom_call.1} parent=1 // pred_check
      _
    $region19: #{tpu_custom_call.1} parent=1 // pred_check_branch
      %55 = sbr.rel (0) target = $region21
    $region20: #{tpu_custom_call.1} parent=1 // pred_region
      _
    $region21: #{tpu_custom_call.1} parent=1 // pred_fallthru
      _
    // Predicated region
    $region22: #{tpu_custom_call.1} parent=1 // pred_check
      _
    $region23: #{tpu_custom_call.1} parent=1 // pred_check_branch
      %57 = sbr.rel (0) target = $region25
    $region24: #{tpu_custom_call.1} parent=1 // pred_region
      %s59 = ssub.s32 8192, 8192
      %60 = vsyncadd [#allocation9], %s59
      %s61 = sshll.u32 [#allocation8], 4
      %s62 = int_to_ptr.vmem [resolvable:$true] %s61
      %67 = dma.hbm_to_vmem [thread:$0]  %s5, 8192, %s62, [#allocation9], 128, 128, 8
    $region25: #{tpu_custom_call.1} parent=1 // pred_fallthru
      _
    // Predicated region
    $region26: #{tpu_custom_call.1} parent=1 // pred_check
      _
    $region27: #{tpu_custom_call.1} parent=1 // pred_check_branch
      %69 = sbr.rel (0) target = $region29
    $region28: #{tpu_custom_call.1} parent=1 // pred_region
      _
    $region29: #{tpu_custom_call.1} parent=1 // pred_fallthru
      _
    // Predicated region
    $region30: #{tpu_custom_call.1} parent=1 // pred_check
      _
    $region31: #{tpu_custom_call.1} parent=1 // pred_check_branch
      %71 = sbr.rel (0) target = $region33
    $region32: #{tpu_custom_call.1} parent=1 // pred_region
      %72 = dma.done [#allocation3], 256
    $region33: #{tpu_custom_call.1} parent=1 // pred_fallthru
      _
    // Predicated region
    $region34: #{tpu_custom_call.1} parent=1 // pred_check
      _
    $region35: #{tpu_custom_call.1} parent=1 // pred_check_branch
      %74 = sbr.rel (0) target = $region37
    $region36: #{tpu_custom_call.1} parent=1 // pred_region
      %75 = dma.done [#allocation6], 512
    $region37: #{tpu_custom_call.1} parent=1 // pred_fallthru
      _
    // Predicated region
    $region38: #{tpu_custom_call.1} parent=1 // pred_check
      _
    $region39: #{tpu_custom_call.1} parent=1 // pred_check_branch
      %77 = sbr.rel (0) target = $region41
    $region40: #{tpu_custom_call.1} parent=1 // pred_region
      %78 = dma.done [#allocation6], 8192
    $region41: #{tpu_custom_call.1} parent=1 // pred_fallthru
      _
    // Predicated region
    $region42: #{tpu_custom_call.1} parent=1 // pred_check
      _
    $region43: #{tpu_custom_call.1} parent=1 // pred_check_branch
      %80 = sbr.rel (0) target = $region45
    $region44: #{tpu_custom_call.1} parent=1 // pred_region
      %81 = dma.done [#allocation9], 8192
    $region45: #{tpu_custom_call.1} parent=1 // pred_fallthru
      _
    %v83 = vld [vmem:[#allocation2] sm:$0xff]
    %v84 = vld [vmem:[#allocation2 + $0x8] sm:$0xff]
    %v85 = vpack.c.bf16 %v84, %v83
    %v86 = vld [vmem:[#allocation5] sm:$0xff]
    %v87 = vld [vmem:[#allocation5 + $0x8] sm:$0xff]
    %v88 = vld [vmem:[#allocation5 + $0x10] sm:$0xff]
    %v89 = vld [vmem:[#allocation5 + $0x18] sm:$0xff]
    %v90 = vld [vmem:[%s2] sm:$0x3]
    %v92 = vlaneseq
    %v93 = vshrl.u32 %v92, 7
    %v94 = vsub.s32 0, %v93
    %v95 = vrot.slane %v90, %v94
    %v96 = vlaneseq
    %v97 = vshrl.u32 %v96, 7
    %v98 = vsub.s32 1, %v97
    %v99 = vrot.slane %v90, %v98
    %v106 = vunpack.c.l.b16 %v86
    %v107 = vunpack.c.h.b16 %v86
    %v108 = vunpack.c.l.b16 %v87
    %v109 = vunpack.c.h.b16 %v87
    %v110 = vunpack.c.l.b16 %v88
    %v111 = vunpack.c.h.b16 %v88
    %v112 = vunpack.c.l.b16 %v89
    %v113 = vunpack.c.h.b16 %v89
    %v114 = vpack.c.b16 %v108, %v106
    %v115 = vpack.c.b16 %v109, %v107
    %v116 = vpack.c.b16 %v112, %v110
    %v117 = vpack.c.b16 %v113, %v111
    %vm122 = vcmask 261120
    %v124 = vsel %vm122, %v85, 0
    %126 = vmatprep.subr.bf16.mxu0 %v115
    %127 = vmatpush1.bf16.msra.mxu0 %v114
    %128 = vmatprep.subr.bf16.mxu0 %v117
    %129 = vmatpush1.bf16.msra.mxu0 %v116
    %130 = vmatprep.subr.bf16.mxu0 0
    %131 = vmatpush1.bf16.msra.mxu0 0
    %132 = vmatprep.subr.bf16.mxu0 0
    %133 = vmatpush1.bf16.msra.mxu0 0
    %134 = vmatprep.subr.bf16.mxu0 0
    %135 = vmatpush1.bf16.msra.mxu0 0
    %136 = vmatprep.subr.bf16.mxu0 0
    %137 = vmatpush1.bf16.msra.mxu0 0
    %138 = vmatprep.subr.bf16.mxu0 0
    %139 = vmatpush1.bf16.msra.mxu0 0
    %140 = vmatprep.subr.bf16.mxu0 0
    %141 = vmatpush1.bf16.msra.mxu0 0
    %142 = vmatprep.subr.bf16.mxu0 0
    %143 = vmatpush1.bf16.msra.mxu0 0
    %144 = vmatprep.subr.bf16.mxu0 0
    %145 = vmatpush1.bf16.msra.mxu0 0
    %146 = vmatprep.subr.bf16.mxu0 0
    %147 = vmatpush1.bf16.msra.mxu0 0
    %148 = vmatprep.subr.bf16.mxu0 0
    %149 = vmatpush1.bf16.msra.mxu0 0
    %150 = vmatprep.subr.bf16.mxu0 0
    %151 = vmatpush1.bf16.msra.mxu0 0
    %152 = vmatprep.subr.bf16.mxu0 0
    %153 = vmatpush1.bf16.msra.mxu0 0
    %154 = vmatprep.subr.bf16.mxu0 0
    %155 = vmatpush1.bf16.msra.mxu0 0
    %156 = vmatprep.subr.bf16.mxu0 0
    %157 = vmatpush1.bf16.msra.mxu0 0
    %158 = vmatprep.mubr.bf16.mxu0 0
    %159 = vmatmul.mubr.bf16.gmra.mrb[0].mxu0 %v124
    %v160 = vpop.f32.mrb[0].mxu0
    %v161 = vadd.f32 %v95, %v160
    %v162 = vpop.f32.mrb[0].mxu0
    %v163 = vadd.f32 %v99, %v162
    %v164 = vpop.f32.mrb[0].mxu0
    %v165 = vadd.f32 %v95, %v164
    %v166 = vpop.f32.mrb[0].mxu0
    %v167 = vadd.f32 %v99, %v166
    %168 = vdwg.mxu0
    %v169 = vmax.f32 %v161, 0.0
    %v170 = vmax.f32 %v163, 0.0
    %v171 = vmax.f32 %v165, 0.0
    %v172 = vmax.f32 %v167, 0.0
    %v173 = vpack.c.bf16 %v171, %v169
    %v174 = vpack.c.bf16 %v172, %v170
    %v175 = vld [vmem:[#allocation7] sm:$0xff]
    %v176 = vld [vmem:[#allocation7 + $0x8] sm:$0xff]
    %v177 = vld [vmem:[#allocation7 + $0x10] sm:$0xff]
    %v178 = vld [vmem:[#allocation7 + $0x18] sm:$0xff]
    %v179 = vld [vmem:[#allocation7 + $0x20] sm:$0xff]
    %v180 = vld [vmem:[#allocation7 + $0x28] sm:$0xff]
    %v181 = vld [vmem:[#allocation7 + $0x30] sm:$0xff]
    %v182 = vld [vmem:[#allocation7 + $0x38] sm:$0xff]
    %v183 = vld [vmem:[#allocation7 + $0x40] sm:$0xff]
    %v184 = vld [vmem:[#allocation7 + $0x48] sm:$0xff]
    %v185 = vld [vmem:[#allocation7 + $0x50] sm:$0xff]
    %v186 = vld [vmem:[#allocation7 + $0x58] sm:$0xff]
    %v187 = vld [vmem:[#allocation7 + $0x60] sm:$0xff]
    %v188 = vld [vmem:[#allocation7 + $0x68] sm:$0xff]
    %v189 = vld [vmem:[#allocation7 + $0x70] sm:$0xff]
    %v190 = vld [vmem:[#allocation7 + $0x78] sm:$0xff]
    %v191 = vld [vmem:[#allocation7 + $0x80] sm:$0xff]
    %v192 = vld [vmem:[#allocation7 + $0x88] sm:$0xff]
    %v193 = vld [vmem:[#allocation7 + $0x90] sm:$0xff]
    %v194 = vld [vmem:[#allocation7 + $0x98] sm:$0xff]
    %v195 = vld [vmem:[#allocation7 + $0xa0] sm:$0xff]
    %v196 = vld [vmem:[#allocation7 + $0xa8] sm:$0xff]
    %v197 = vld [vmem:[#allocation7 + $0xb0] sm:$0xff]
    %v198 = vld [vmem:[#allocation7 + $0xb8] sm:$0xff]
    %v199 = vld [vmem:[#allocation7 + $0xc0] sm:$0xff]
    %v200 = vld [vmem:[#allocation7 + $0xc8] sm:$0xff]
    %v201 = vld [vmem:[#allocation7 + $0xd0] sm:$0xff]
    %v202 = vld [vmem:[#allocation7 + $0xd8] sm:$0xff]
    %v203 = vld [vmem:[#allocation7 + $0xe0] sm:$0xff]
    %v204 = vld [vmem:[#allocation7 + $0xe8] sm:$0xff]
    %v205 = vld [vmem:[#allocation7 + $0xf0] sm:$0xff]
    %v206 = vld [vmem:[#allocation7 + $0xf8] sm:$0xff]
    %v207 = vld [vmem:[#allocation7 + $0x100] sm:$0xff]
    %v208 = vld [vmem:[#allocation7 + $0x108] sm:$0xff]
    %v209 = vld [vmem:[#allocation7 + $0x110] sm:$0xff]
    %v210 = vld [vmem:[#allocation7 + $0x118] sm:$0xff]
    %v211 = vld [vmem:[#allocation7 + $0x120] sm:$0xff]
    %v212 = vld [vmem:[#allocation7 + $0x128] sm:$0xff]
    %v213 = vld [vmem:[#allocation7 + $0x130] sm:$0xff]
    %v214 = vld [vmem:[#allocation7 + $0x138] sm:$0xff]
    %v215 = vld [vmem:[#allocation7 + $0x140] sm:$0xff]
    %v216 = vld [vmem:[#allocation7 + $0x148] sm:$0xff]
    %v217 = vld [vmem:[#allocation7 + $0x150] sm:$0xff]
    %v218 = vld [vmem:[#allocation7 + $0x158] sm:$0xff]
    %v219 = vld [vmem:[#allocation7 + $0x160] sm:$0xff]
    %v220 = vld [vmem:[#allocation7 + $0x168] sm:$0xff]
    %v221 = vld [vmem:[#allocation7 + $0x170] sm:$0xff]
    %v222 = vld [vmem:[#allocation7 + $0x178] sm:$0xff]
    %v223 = vld [vmem:[#allocation7 + $0x180] sm:$0xff]
    %v224 = vld [vmem:[#allocation7 + $0x188] sm:$0xff]
    %v225 = vld [vmem:[#allocation7 + $0x190] sm:$0xff]
    %v226 = vld [vmem:[#allocation7 + $0x198] sm:$0xff]
    %v227 = vld [vmem:[#allocation7 + $0x1a0] sm:$0xff]
    %v228 = vld [vmem:[#allocation7 + $0x1a8] sm:$0xff]
    %v229 = vld [vmem:[#allocation7 + $0x1b0] sm:$0xff]
    %v230 = vld [vmem:[#allocation7 + $0x1b8] sm:$0xff]
    %v231 = vld [vmem:[#allocation7 + $0x1c0] sm:$0xff]
    %v232 = vld [vmem:[#allocation7 + $0x1c8] sm:$0xff]
    %v233 = vld [vmem:[#allocation7 + $0x1d0] sm:$0xff]
    %v234 = vld [vmem:[#allocation7 + $0x1d8] sm:$0xff]
    %v235 = vld [vmem:[#allocation7 + $0x1e0] sm:$0xff]
    %v236 = vld [vmem:[#allocation7 + $0x1e8] sm:$0xff]
    %v237 = vld [vmem:[#allocation7 + $0x1f0] sm:$0xff]
    %v238 = vld [vmem:[#allocation7 + $0x1f8] sm:$0xff]
    %v239 = vld [vmem:[%s4] sm:$0xf]
    %v241 = vlaneseq
    %v242 = vshrl.u32 %v241, 7
    %v243 = vsub.s32 0, %v242
    %v244 = vrot.slane %v239, %v243
    %v245 = vlaneseq
    %v246 = vshrl.u32 %v245, 7
    %v247 = vsub.s32 1, %v246
    %v248 = vrot.slane %v239, %v247
    %v249 = vlaneseq
    %v250 = vshrl.u32 %v249, 7
    %v251 = vsub.s32 2, %v250
    %v252 = vrot.slane %v239, %v251
    %v253 = vlaneseq
    %v254 = vshrl.u32 %v253, 7
    %v255 = vsub.s32 3, %v254
    %v256 = vrot.slane %v239, %v255
    %v325 = vunpack.c.l.b16 %v175
    %v326 = vunpack.c.h.b16 %v175
    %v327 = vunpack.c.l.b16 %v176
    %v328 = vunpack.c.h.b16 %v176
    %v329 = vunpack.c.l.b16 %v177
    %v330 = vunpack.c.h.b16 %v177
    %v331 = vunpack.c.l.b16 %v178
    %v332 = vunpack.c.h.b16 %v178
    %v333 = vunpack.c.l.b16 %v179
    %v334 = vunpack.c.h.b16 %v179
    %v335 = vunpack.c.l.b16 %v180
    %v336 = vunpack.c.h.b16 %v180
    %v337 = vunpack.c.l.b16 %v181
    %v338 = vunpack.c.h.b16 %v181
    %v339 = vunpack.c.l.b16 %v182
    %v340 = vunpack.c.h.b16 %v182
    %v341 = vunpack.c.l.b16 %v183
    %v342 = vunpack.c.h.b16 %v183
    %v343 = vunpack.c.l.b16 %v184
    %v344 = vunpack.c.h.b16 %v184
    %v345 = vunpack.c.l.b16 %v185
    %v346 = vunpack.c.h.b16 %v185
    %v347 = vunpack.c.l.b16 %v186
    %v348 = vunpack.c.h.b16 %v186
    %v349 = vunpack.c.l.b16 %v187
    %v350 = vunpack.c.h.b16 %v187
    %v351 = vunpack.c.l.b16 %v188
    %v352 = vunpack.c.h.b16 %v188
    %v353 = vunpack.c.l.b16 %v189
    %v354 = vunpack.c.h.b16 %v189
    %v355 = vunpack.c.l.b16 %v190
    %v356 = vunpack.c.h.b16 %v190
    %v357 = vunpack.c.l.b16 %v191
    %v358 = vunpack.c.h.b16 %v191
    %v359 = vunpack.c.l.b16 %v192
    %v360 = vunpack.c.h.b16 %v192
    %v361 = vunpack.c.l.b16 %v193
    %v362 = vunpack.c.h.b16 %v193
    %v363 = vunpack.c.l.b16 %v194
    %v364 = vunpack.c.h.b16 %v194
    %v365 = vunpack.c.l.b16 %v195
    %v366 = vunpack.c.h.b16 %v195
    %v367 = vunpack.c.l.b16 %v196
    %v368 = vunpack.c.h.b16 %v196
    %v369 = vunpack.c.l.b16 %v197
    %v370 = vunpack.c.h.b16 %v197
    %v371 = vunpack.c.l.b16 %v198
    %v372 = vunpack.c.h.b16 %v198
    %v373 = vunpack.c.l.b16 %v199
    %v374 = vunpack.c.h.b16 %v199
    %v375 = vunpack.c.l.b16 %v200
    %v376 = vunpack.c.h.b16 %v200
    %v377 = vunpack.c.l.b16 %v201
    %v378 = vunpack.c.h.b16 %v201
    %v379 = vunpack.c.l.b16 %v202
    %v380 = vunpack.c.h.b16 %v202
    %v381 = vunpack.c.l.b16 %v203
    %v382 = vunpack.c.h.b16 %v203
    %v383 = vunpack.c.l.b16 %v204
    %v384 = vunpack.c.h.b16 %v204
    %v385 = vunpack.c.l.b16 %v205
    %v386 = vunpack.c.h.b16 %v205
    %v387 = vunpack.c.l.b16 %v206
    %v388 = vunpack.c.h.b16 %v206
    %v389 = vunpack.c.l.b16 %v207
    %v390 = vunpack.c.h.b16 %v207
    %v391 = vunpack.c.l.b16 %v208
    %v392 = vunpack.c.h.b16 %v208
    %v393 = vunpack.c.l.b16 %v209
    %v394 = vunpack.c.h.b16 %v209
    %v395 = vunpack.c.l.b16 %v210
    %v396 = vunpack.c.h.b16 %v210
    %v397 = vunpack.c.l.b16 %v211
    %v398 = vunpack.c.h.b16 %v211
    %v399 = vunpack.c.l.b16 %v212
    %v400 = vunpack.c.h.b16 %v212
    %v401 = vunpack.c.l.b16 %v213
    %v402 = vunpack.c.h.b16 %v213
    %v403 = vunpack.c.l.b16 %v214
    %v404 = vunpack.c.h.b16 %v214
    %v405 = vunpack.c.l.b16 %v215
    %v406 = vunpack.c.h.b16 %v215
    %v407 = vunpack.c.l.b16 %v216
    %v408 = vunpack.c.h.b16 %v216
    %v409 = vunpack.c.l.b16 %v217
    %v410 = vunpack.c.h.b16 %v217
    %v411 = vunpack.c.l.b16 %v218
    %v412 = vunpack.c.h.b16 %v218
    %v413 = vunpack.c.l.b16 %v219
    %v414 = vunpack.c.h.b16 %v219
    %v415 = vunpack.c.l.b16 %v220
    %v416 = vunpack.c.h.b16 %v220
    %v417 = vunpack.c.l.b16 %v221
    %v418 = vunpack.c.h.b16 %v221
    %v419 = vunpack.c.l.b16 %v222
    %v420 = vunpack.c.h.b16 %v222
    %v421 = vunpack.c.l.b16 %v223
    %v422 = vunpack.c.h.b16 %v223
    %v423 = vunpack.c.l.b16 %v224
    %v424 = vunpack.c.h.b16 %v224
    %v425 = vunpack.c.l.b16 %v225
    %v426 = vunpack.c.h.b16 %v225
    %v427 = vunpack.c.l.b16 %v226
    %v428 = vunpack.c.h.b16 %v226
    %v429 = vunpack.c.l.b16 %v227
    %v430 = vunpack.c.h.b16 %v227
    %v431 = vunpack.c.l.b16 %v228
    %v432 = vunpack.c.h.b16 %v228
    %v433 = vunpack.c.l.b16 %v229
    %v434 = vunpack.c.h.b16 %v229
    %v435 = vunpack.c.l.b16 %v230
    %v436 = vunpack.c.h.b16 %v230
    %v437 = vunpack.c.l.b16 %v231
    %v438 = vunpack.c.h.b16 %v231
    %v439 = vunpack.c.l.b16 %v232
    %v440 = vunpack.c.h.b16 %v232
    %v441 = vunpack.c.l.b16 %v233
    %v442 = vunpack.c.h.b16 %v233
    %v443 = vunpack.c.l.b16 %v234
    %v444 = vunpack.c.h.b16 %v234
    %v445 = vunpack.c.l.b16 %v235
    %v446 = vunpack.c.h.b16 %v235
    %v447 = vunpack.c.l.b16 %v236
    %v448 = vunpack.c.h.b16 %v236
    %v449 = vunpack.c.l.b16 %v237
    %v450 = vunpack.c.h.b16 %v237
    %v451 = vunpack.c.l.b16 %v238
    %v452 = vunpack.c.h.b16 %v238
    %v453 = vpack.c.b16 %v329, %v325
    %v454 = vpack.c.b16 %v330, %v326
    %v455 = vpack.c.b16 %v331, %v327
    %v456 = vpack.c.b16 %v332, %v328
    %v457 = vpack.c.b16 %v337, %v333
    %v458 = vpack.c.b16 %v338, %v334
    %v459 = vpack.c.b16 %v339, %v335
    %v460 = vpack.c.b16 %v340, %v336
    %v461 = vpack.c.b16 %v345, %v341
    %v462 = vpack.c.b16 %v346, %v342
    %v463 = vpack.c.b16 %v347, %v343
    %v464 = vpack.c.b16 %v348, %v344
    %v465 = vpack.c.b16 %v353, %v349
    %v466 = vpack.c.b16 %v354, %v350
    %v467 = vpack.c.b16 %v355, %v351
    %v468 = vpack.c.b16 %v356, %v352
    %v469 = vpack.c.b16 %v361, %v357
    %v470 = vpack.c.b16 %v362, %v358
    %v471 = vpack.c.b16 %v363, %v359
    %v472 = vpack.c.b16 %v364, %v360
    %v473 = vpack.c.b16 %v369, %v365
    %v474 = vpack.c.b16 %v370, %v366
    %v475 = vpack.c.b16 %v371, %v367
    %v476 = vpack.c.b16 %v372, %v368
    %v477 = vpack.c.b16 %v377, %v373
    %v478 = vpack.c.b16 %v378, %v374
    %v479 = vpack.c.b16 %v379, %v375
    %v480 = vpack.c.b16 %v380, %v376
    %v481 = vpack.c.b16 %v385, %v381
    %v482 = vpack.c.b16 %v386, %v382
    %v483 = vpack.c.b16 %v387, %v383
    %v484 = vpack.c.b16 %v388, %v384
    %v485 = vpack.c.b16 %v393, %v389
    %v486 = vpack.c.b16 %v394, %v390
    %v487 = vpack.c.b16 %v395, %v391
    %v488 = vpack.c.b16 %v396, %v392
    %v489 = vpack.c.b16 %v401, %v397
    %v490 = vpack.c.b16 %v402, %v398
    %v491 = vpack.c.b16 %v403, %v399
    %v492 = vpack.c.b16 %v404, %v400
    %v493 = vpack.c.b16 %v409, %v405
    %v494 = vpack.c.b16 %v410, %v406
    %v495 = vpack.c.b16 %v411, %v407
    %v496 = vpack.c.b16 %v412, %v408
    %v497 = vpack.c.b16 %v417, %v413
    %v498 = vpack.c.b16 %v418, %v414
    %v499 = vpack.c.b16 %v419, %v415
    %v500 = vpack.c.b16 %v420, %v416
    %v501 = vpack.c.b16 %v425, %v421
    %v502 = vpack.c.b16 %v426, %v422
    %v503 = vpack.c.b16 %v427, %v423
    %v504 = vpack.c.b16 %v428, %v424
    %v505 = vpack.c.b16 %v433, %v429
    %v506 = vpack.c.b16 %v434, %v430
    %v507 = vpack.c.b16 %v435, %v431
    %v508 = vpack.c.b16 %v436, %v432
    %v509 = vpack.c.b16 %v441, %v437
    %v510 = vpack.c.b16 %v442, %v438
    %v511 = vpack.c.b16 %v443, %v439
    %v512 = vpack.c.b16 %v444, %v440
    %v513 = vpack.c.b16 %v449, %v445
    %v514 = vpack.c.b16 %v450, %v446
    %v515 = vpack.c.b16 %v451, %v447
    %v516 = vpack.c.b16 %v452, %v448
    %581 = vmatprep.subr.bf16.mxu0 %v454
    %582 = vmatpush1.bf16.msra.mxu0 %v453
    %583 = vmatprep.subr.bf16.mxu0 %v458
    %584 = vmatpush1.bf16.msra.mxu0 %v457
    %585 = vmatprep.subr.bf16.mxu0 %v462
    %586 = vmatpush1.bf16.msra.mxu0 %v461
    %587 = vmatprep.subr.bf16.mxu0 %v466
    %588 = vmatpush1.bf16.msra.mxu0 %v465
    %589 = vmatprep.subr.bf16.mxu0 %v470
    %590 = vmatpush1.bf16.msra.mxu0 %v469
    %591 = vmatprep.subr.bf16.mxu0 %v474
    %592 = vmatpush1.bf16.msra.mxu0 %v473
    %593 = vmatprep.subr.bf16.mxu0 %v478
    %594 = vmatpush1.bf16.msra.mxu0 %v477
    %595 = vmatprep.subr.bf16.mxu0 %v482
    %596 = vmatpush1.bf16.msra.mxu0 %v481
    %597 = vmatprep.subr.bf16.mxu0 %v486
    %598 = vmatpush1.bf16.msra.mxu0 %v485
    %599 = vmatprep.subr.bf16.mxu0 %v490
    %600 = vmatpush1.bf16.msra.mxu0 %v489
    %601 = vmatprep.subr.bf16.mxu0 %v494
    %602 = vmatpush1.bf16.msra.mxu0 %v493
    %603 = vmatprep.subr.bf16.mxu0 %v498
    %604 = vmatpush1.bf16.msra.mxu0 %v497
    %605 = vmatprep.subr.bf16.mxu0 %v502
    %606 = vmatpush1.bf16.msra.mxu0 %v501
    %607 = vmatprep.subr.bf16.mxu0 %v506
    %608 = vmatpush1.bf16.msra.mxu0 %v505
    %609 = vmatprep.subr.bf16.mxu0 %v510
    %610 = vmatpush1.bf16.msra.mxu0 %v509
    %611 = vmatprep.subr.bf16.mxu0 %v514
    %612 = vmatpush1.bf16.msra.mxu0 %v513
    %613 = vmatprep.mubr.bf16.mxu0 %v174
    %614 = vmatmul.mubr.bf16.gmra.mrb[0].mxu0 %v173
    %v615 = vpop.f32.mrb[0].mxu0
    %v616 = vadd.f32 %v244, %v615
    %v617 = vpop.f32.mrb[0].mxu0
    %v618 = vadd.f32 %v248, %v617
    %v619 = vpop.f32.mrb[0].mxu0
    %v620 = vadd.f32 %v244, %v619
    %v621 = vpop.f32.mrb[0].mxu0
    %v622 = vadd.f32 %v248, %v621
    %623 = vdwg.mxu0
    %624 = vmatprep.subr.bf16.mxu0 %v456
    %625 = vmatpush1.bf16.msra.mxu0 %v455
    %626 = vmatprep.subr.bf16.mxu0 %v460
    %627 = vmatpush1.bf16.msra.mxu0 %v459
    %628 = vmatprep.subr.bf16.mxu0 %v464
    %629 = vmatpush1.bf16.msra.mxu0 %v463
    %630 = vmatprep.subr.bf16.mxu0 %v468
    %631 = vmatpush1.bf16.msra.mxu0 %v467
    %632 = vmatprep.subr.bf16.mxu0 %v472
    %633 = vmatpush1.bf16.msra.mxu0 %v471
    %634 = vmatprep.subr.bf16.mxu0 %v476
    %635 = vmatpush1.bf16.msra.mxu0 %v475
    %636 = vmatprep.subr.bf16.mxu0 %v480
    %637 = vmatpush1.bf16.msra.mxu0 %v479
    %638 = vmatprep.subr.bf16.mxu0 %v484
    %639 = vmatpush1.bf16.msra.mxu0 %v483
    %640 = vmatprep.subr.bf16.mxu0 %v488
    %641 = vmatpush1.bf16.msra.mxu0 %v487
    %642 = vmatprep.subr.bf16.mxu0 %v492
    %643 = vmatpush1.bf16.msra.mxu0 %v491
    %644 = vmatprep.subr.bf16.mxu0 %v496
    %645 = vmatpush1.bf16.msra.mxu0 %v495
    %646 = vmatprep.subr.bf16.mxu0 %v500
    %647 = vmatpush1.bf16.msra.mxu0 %v499
    %648 = vmatprep.subr.bf16.mxu0 %v504
    %649 = vmatpush1.bf16.msra.mxu0 %v503
    %650 = vmatprep.subr.bf16.mxu0 %v508
    %651 = vmatpush1.bf16.msra.mxu0 %v507
    %652 = vmatprep.subr.bf16.mxu0 %v512
    %653 = vmatpush1.bf16.msra.mxu0 %v511
    %654 = vmatprep.subr.bf16.mxu0 %v516
    %655 = vmatpush1.bf16.msra.mxu0 %v515
    %656 = vmatprep.mubr.bf16.mxu0 %v174
    %657 = vmatmul.mubr.bf16.gmra.mrb[0].mxu0 %v173
    %v658 = vpop.f32.mrb[0].mxu0
    %v659 = vadd.f32 %v252, %v658
    %v660 = vpop.f32.mrb[0].mxu0
    %v661 = vadd.f32 %v256, %v660
    %v662 = vpop.f32.mrb[0].mxu0
    %v663 = vadd.f32 %v252, %v662
    %v664 = vpop.f32.mrb[0].mxu0
    %v665 = vadd.f32 %v256, %v664
    %666 = vdwg.mxu0
    %v667 = vmax.f32 %v616, 0.0
    %v668 = vmax.f32 %v618, 0.0
    %v669 = vmax.f32 %v659, 0.0
    %v670 = vmax.f32 %v661, 0.0
    %v671 = vmax.f32 %v620, 0.0
    %v672 = vmax.f32 %v622, 0.0
    %v673 = vmax.f32 %v663, 0.0
    %v674 = vmax.f32 %v665, 0.0
    %v675 = vpack.c.bf16 %v671, %v667
    %v676 = vpack.c.bf16 %v672, %v668
    %v677 = vpack.c.bf16 %v673, %v669
    %v678 = vpack.c.bf16 %v674, %v670
    %v679 = vld [vmem:[#allocation8] sm:$0xff]
    %v680 = vld [vmem:[#allocation8 + $0x8] sm:$0xff]
    %v681 = vld [vmem:[#allocation8 + $0x10] sm:$0xff]
    %v682 = vld [vmem:[#allocation8 + $0x18] sm:$0xff]
    %v683 = vld [vmem:[#allocation8 + $0x20] sm:$0xff]
    %v684 = vld [vmem:[#allocation8 + $0x28] sm:$0xff]
    %v685 = vld [vmem:[#allocation8 + $0x30] sm:$0xff]
    %v686 = vld [vmem:[#allocation8 + $0x38] sm:$0xff]
    %v687 = vld [vmem:[#allocation8 + $0x40] sm:$0xff]
    %v688 = vld [vmem:[#allocation8 + $0x48] sm:$0xff]
    %v689 = vld [vmem:[#allocation8 + $0x50] sm:$0xff]
    %v690 = vld [vmem:[#allocation8 + $0x58] sm:$0xff]
    %v691 = vld [vmem:[#allocation8 + $0x60] sm:$0xff]
    %v692 = vld [vmem:[#allocation8 + $0x68] sm:$0xff]
    %v693 = vld [vmem:[#allocation8 + $0x70] sm:$0xff]
    %v694 = vld [vmem:[#allocation8 + $0x78] sm:$0xff]
    %v695 = vld [vmem:[#allocation8 + $0x80] sm:$0xff]
    %v696 = vld [vmem:[#allocation8 + $0x88] sm:$0xff]
    %v697 = vld [vmem:[#allocation8 + $0x90] sm:$0xff]
    %v698 = vld [vmem:[#allocation8 + $0x98] sm:$0xff]
    %v699 = vld [vmem:[#allocation8 + $0xa0] sm:$0xff]
    %v700 = vld [vmem:[#allocation8 + $0xa8] sm:$0xff]
    %v701 = vld [vmem:[#allocation8 + $0xb0] sm:$0xff]
    %v702 = vld [vmem:[#allocation8 + $0xb8] sm:$0xff]
    %v703 = vld [vmem:[#allocation8 + $0xc0] sm:$0xff]
    %v704 = vld [vmem:[#allocation8 + $0xc8] sm:$0xff]
    %v705 = vld [vmem:[#allocation8 + $0xd0] sm:$0xff]
    %v706 = vld [vmem:[#allocation8 + $0xd8] sm:$0xff]
    %v707 = vld [vmem:[#allocation8 + $0xe0] sm:$0xff]
    %v708 = vld [vmem:[#allocation8 + $0xe8] sm:$0xff]
    %v709 = vld [vmem:[#allocation8 + $0xf0] sm:$0xff]
    %v710 = vld [vmem:[#allocation8 + $0xf8] sm:$0xff]
    %v711 = vld [vmem:[#allocation8 + $0x100] sm:$0xff]
    %v712 = vld [vmem:[#allocation8 + $0x108] sm:$0xff]
    %v713 = vld [vmem:[#allocation8 + $0x110] sm:$0xff]
    %v714 = vld [vmem:[#allocation8 + $0x118] sm:$0xff]
    %v715 = vld [vmem:[#allocation8 + $0x120] sm:$0xff]
    %v716 = vld [vmem:[#allocation8 + $0x128] sm:$0xff]
    %v717 = vld [vmem:[#allocation8 + $0x130] sm:$0xff]
    %v718 = vld [vmem:[#allocation8 + $0x138] sm:$0xff]
    %v719 = vld [vmem:[#allocation8 + $0x140] sm:$0xff]
    %v720 = vld [vmem:[#allocation8 + $0x148] sm:$0xff]
    %v721 = vld [vmem:[#allocation8 + $0x150] sm:$0xff]
    %v722 = vld [vmem:[#allocation8 + $0x158] sm:$0xff]
    %v723 = vld [vmem:[#allocation8 + $0x160] sm:$0xff]
    %v724 = vld [vmem:[#allocation8 + $0x168] sm:$0xff]
    %v725 = vld [vmem:[#allocation8 + $0x170] sm:$0xff]
    %v726 = vld [vmem:[#allocation8 + $0x178] sm:$0xff]
    %v727 = vld [vmem:[#allocation8 + $0x180] sm:$0xff]
    %v728 = vld [vmem:[#allocation8 + $0x188] sm:$0xff]
    %v729 = vld [vmem:[#allocation8 + $0x190] sm:$0xff]
    %v730 = vld [vmem:[#allocation8 + $0x198] sm:$0xff]
    %v731 = vld [vmem:[#allocation8 + $0x1a0] sm:$0xff]
    %v732 = vld [vmem:[#allocation8 + $0x1a8] sm:$0xff]
    %v733 = vld [vmem:[#allocation8 + $0x1b0] sm:$0xff]
    %v734 = vld [vmem:[#allocation8 + $0x1b8] sm:$0xff]
    %v735 = vld [vmem:[#allocation8 + $0x1c0] sm:$0xff]
    %v736 = vld [vmem:[#allocation8 + $0x1c8] sm:$0xff]
    %v737 = vld [vmem:[#allocation8 + $0x1d0] sm:$0xff]
    %v738 = vld [vmem:[#allocation8 + $0x1d8] sm:$0xff]
    %v739 = vld [vmem:[#allocation8 + $0x1e0] sm:$0xff]
    %v740 = vld [vmem:[#allocation8 + $0x1e8] sm:$0xff]
    %v741 = vld [vmem:[#allocation8 + $0x1f0] sm:$0xff]
    %v742 = vld [vmem:[#allocation8 + $0x1f8] sm:$0xff]
    %v743 = vld [vmem:[%s6] sm:$0x3]
    %v745 = vlaneseq
    %v746 = vshrl.u32 %v745, 7
    %v747 = vsub.s32 0, %v746
    %v748 = vrot.slane %v743, %v747
    %v749 = vlaneseq
    %v750 = vshrl.u32 %v749, 7
    %v751 = vsub.s32 1, %v750
    %v752 = vrot.slane %v743, %v751
    %v819 = vunpack.c.l.b16 %v679
    %v820 = vunpack.c.h.b16 %v679
    %v821 = vunpack.c.l.b16 %v680
    %v822 = vunpack.c.h.b16 %v680
    %v823 = vunpack.c.l.b16 %v681
    %v824 = vunpack.c.h.b16 %v681
    %v825 = vunpack.c.l.b16 %v682
    %v826 = vunpack.c.h.b16 %v682
    %v827 = vunpack.c.l.b16 %v683
    %v828 = vunpack.c.h.b16 %v683
    %v829 = vunpack.c.l.b16 %v684
    %v830 = vunpack.c.h.b16 %v684
    %v831 = vunpack.c.l.b16 %v685
    %v832 = vunpack.c.h.b16 %v685
    %v833 = vunpack.c.l.b16 %v686
    %v834 = vunpack.c.h.b16 %v686
    %v835 = vunpack.c.l.b16 %v687
    %v836 = vunpack.c.h.b16 %v687
    %v837 = vunpack.c.l.b16 %v688
    %v838 = vunpack.c.h.b16 %v688
    %v839 = vunpack.c.l.b16 %v689
    %v840 = vunpack.c.h.b16 %v689
    %v841 = vunpack.c.l.b16 %v690
    %v842 = vunpack.c.h.b16 %v690
    %v843 = vunpack.c.l.b16 %v691
    %v844 = vunpack.c.h.b16 %v691
    %v845 = vunpack.c.l.b16 %v692
    %v846 = vunpack.c.h.b16 %v692
    %v847 = vunpack.c.l.b16 %v693
    %v848 = vunpack.c.h.b16 %v693
    %v849 = vunpack.c.l.b16 %v694
    %v850 = vunpack.c.h.b16 %v694
    %v851 = vunpack.c.l.b16 %v695
    %v852 = vunpack.c.h.b16 %v695
    %v853 = vunpack.c.l.b16 %v696
    %v854 = vunpack.c.h.b16 %v696
    %v855 = vunpack.c.l.b16 %v697
    %v856 = vunpack.c.h.b16 %v697
    %v857 = vunpack.c.l.b16 %v698
    %v858 = vunpack.c.h.b16 %v698
    %v859 = vunpack.c.l.b16 %v699
    %v860 = vunpack.c.h.b16 %v699
    %v861 = vunpack.c.l.b16 %v700
    %v862 = vunpack.c.h.b16 %v700
    %v863 = vunpack.c.l.b16 %v701
    %v864 = vunpack.c.h.b16 %v701
    %v865 = vunpack.c.l.b16 %v702
    %v866 = vunpack.c.h.b16 %v702
    %v867 = vunpack.c.l.b16 %v703
    %v868 = vunpack.c.h.b16 %v703
    %v869 = vunpack.c.l.b16 %v704
    %v870 = vunpack.c.h.b16 %v704
    %v871 = vunpack.c.l.b16 %v705
    %v872 = vunpack.c.h.b16 %v705
    %v873 = vunpack.c.l.b16 %v706
    %v874 = vunpack.c.h.b16 %v706
    %v875 = vunpack.c.l.b16 %v707
    %v876 = vunpack.c.h.b16 %v707
    %v877 = vunpack.c.l.b16 %v708
    %v878 = vunpack.c.h.b16 %v708
    %v879 = vunpack.c.l.b16 %v709
    %v880 = vunpack.c.h.b16 %v709
    %v881 = vunpack.c.l.b16 %v710
    %v882 = vunpack.c.h.b16 %v710
    %v883 = vunpack.c.l.b16 %v711
    %v884 = vunpack.c.h.b16 %v711
    %v885 = vunpack.c.l.b16 %v712
    %v886 = vunpack.c.h.b16 %v712
    %v887 = vunpack.c.l.b16 %v713
    %v888 = vunpack.c.h.b16 %v713
    %v889 = vunpack.c.l.b16 %v714
    %v890 = vunpack.c.h.b16 %v714
    %v891 = vunpack.c.l.b16 %v715
    %v892 = vunpack.c.h.b16 %v715
    %v893 = vunpack.c.l.b16 %v716
    %v894 = vunpack.c.h.b16 %v716
    %v895 = vunpack.c.l.b16 %v717
    %v896 = vunpack.c.h.b16 %v717
    %v897 = vunpack.c.l.b16 %v718
    %v898 = vunpack.c.h.b16 %v718
    %v899 = vunpack.c.l.b16 %v719
    %v900 = vunpack.c.h.b16 %v719
    %v901 = vunpack.c.l.b16 %v720
    %v902 = vunpack.c.h.b16 %v720
    %v903 = vunpack.c.l.b16 %v721
    %v904 = vunpack.c.h.b16 %v721
    %v905 = vunpack.c.l.b16 %v722
    %v906 = vunpack.c.h.b16 %v722
    %v907 = vunpack.c.l.b16 %v723
    %v908 = vunpack.c.h.b16 %v723
    %v909 = vunpack.c.l.b16 %v724
    %v910 = vunpack.c.h.b16 %v724
    %v911 = vunpack.c.l.b16 %v725
    %v912 = vunpack.c.h.b16 %v725
    %v913 = vunpack.c.l.b16 %v726
    %v914 = vunpack.c.h.b16 %v726
    %v915 = vunpack.c.l.b16 %v727
    %v916 = vunpack.c.h.b16 %v727
    %v917 = vunpack.c.l.b16 %v728
    %v918 = vunpack.c.h.b16 %v728
    %v919 = vunpack.c.l.b16 %v729
    %v920 = vunpack.c.h.b16 %v729
    %v921 = vunpack.c.l.b16 %v730
    %v922 = vunpack.c.h.b16 %v730
    %v923 = vunpack.c.l.b16 %v731
    %v924 = vunpack.c.h.b16 %v731
    %v925 = vunpack.c.l.b16 %v732
    %v926 = vunpack.c.h.b16 %v732
    %v927 = vunpack.c.l.b16 %v733
    %v928 = vunpack.c.h.b16 %v733
    %v929 = vunpack.c.l.b16 %v734
    %v930 = vunpack.c.h.b16 %v734
    %v931 = vunpack.c.l.b16 %v735
    %v932 = vunpack.c.h.b16 %v735
    %v933 = vunpack.c.l.b16 %v736
    %v934 = vunpack.c.h.b16 %v736
    %v935 = vunpack.c.l.b16 %v737
    %v936 = vunpack.c.h.b16 %v737
    %v937 = vunpack.c.l.b16 %v738
    %v938 = vunpack.c.h.b16 %v738
    %v939 = vunpack.c.l.b16 %v739
    %v940 = vunpack.c.h.b16 %v739
    %v941 = vunpack.c.l.b16 %v740
    %v942 = vunpack.c.h.b16 %v740
    %v943 = vunpack.c.l.b16 %v741
    %v944 = vunpack.c.h.b16 %v741
    %v945 = vunpack.c.l.b16 %v742
    %v946 = vunpack.c.h.b16 %v742
    %v947 = vpack.c.b16 %v821, %v819
    %v948 = vpack.c.b16 %v822, %v820
    %v949 = vpack.c.b16 %v825, %v823
    %v950 = vpack.c.b16 %v826, %v824
    %v951 = vpack.c.b16 %v829, %v827
    %v952 = vpack.c.b16 %v830, %v828
    %v953 = vpack.c.b16 %v833, %v831
    %v954 = vpack.c.b16 %v834, %v832
    %v955 = vpack.c.b16 %v837, %v835
    %v956 = vpack.c.b16 %v838, %v836
    %v957 = vpack.c.b16 %v841, %v839
    %v958 = vpack.c.b16 %v842, %v840
    %v959 = vpack.c.b16 %v845, %v843
    %v960 = vpack.c.b16 %v846, %v844
    %v961 = vpack.c.b16 %v849, %v847
    %v962 = vpack.c.b16 %v850, %v848
    %v963 = vpack.c.b16 %v853, %v851
    %v964 = vpack.c.b16 %v854, %v852
    %v965 = vpack.c.b16 %v857, %v855
    %v966 = vpack.c.b16 %v858, %v856
    %v967 = vpack.c.b16 %v861, %v859
    %v968 = vpack.c.b16 %v862, %v860
    %v969 = vpack.c.b16 %v865, %v863
    %v970 = vpack.c.b16 %v866, %v864
    %v971 = vpack.c.b16 %v869, %v867
    %v972 = vpack.c.b16 %v870, %v868
    %v973 = vpack.c.b16 %v873, %v871
    %v974 = vpack.c.b16 %v874, %v872
    %v975 = vpack.c.b16 %v877, %v875
    %v976 = vpack.c.b16 %v878, %v876
    %v977 = vpack.c.b16 %v881, %v879
    %v978 = vpack.c.b16 %v882, %v880
    %v979 = vpack.c.b16 %v885, %v883
    %v980 = vpack.c.b16 %v886, %v884
    %v981 = vpack.c.b16 %v889, %v887
    %v982 = vpack.c.b16 %v890, %v888
    %v983 = vpack.c.b16 %v893, %v891
    %v984 = vpack.c.b16 %v894, %v892
    %v985 = vpack.c.b16 %v897, %v895
    %v986 = vpack.c.b16 %v898, %v896
    %v987 = vpack.c.b16 %v901, %v899
    %v988 = vpack.c.b16 %v902, %v900
    %v989 = vpack.c.b16 %v905, %v903
    %v990 = vpack.c.b16 %v906, %v904
    %v991 = vpack.c.b16 %v909, %v907
    %v992 = vpack.c.b16 %v910, %v908
    %v993 = vpack.c.b16 %v913, %v911
    %v994 = vpack.c.b16 %v914, %v912
    %v995 = vpack.c.b16 %v917, %v915
    %v996 = vpack.c.b16 %v918, %v916
    %v997 = vpack.c.b16 %v921, %v919
    %v998 = vpack.c.b16 %v922, %v920
    %v999 = vpack.c.b16 %v925, %v923
    %v1000 = vpack.c.b16 %v926, %v924
    %v1001 = vpack.c.b16 %v929, %v927
    %v1002 = vpack.c.b16 %v930, %v928
    %v1003 = vpack.c.b16 %v933, %v931
    %v1004 = vpack.c.b16 %v934, %v932
    %v1005 = vpack.c.b16 %v937, %v935
    %v1006 = vpack.c.b16 %v938, %v936
    %v1007 = vpack.c.b16 %v941, %v939
    %v1008 = vpack.c.b16 %v942, %v940
    %v1009 = vpack.c.b16 %v945, %v943
    %v1010 = vpack.c.b16 %v946, %v944
    %1075 = vmatprep.subr.bf16.mxu0 %v948
    %1076 = vmatpush1.bf16.msra.mxu0 %v947
    %1077 = vmatprep.subr.bf16.mxu0 %v950
    %1078 = vmatpush1.bf16.msra.mxu0 %v949
    %1079 = vmatprep.subr.bf16.mxu0 %v952
    %1080 = vmatpush1.bf16.msra.mxu0 %v951
    %1081 = vmatprep.subr.bf16.mxu0 %v954
    %1082 = vmatpush1.bf16.msra.mxu0 %v953
    %1083 = vmatprep.subr.bf16.mxu0 %v956
    %1084 = vmatpush1.bf16.msra.mxu0 %v955
    %1085 = vmatprep.subr.bf16.mxu0 %v958
    %1086 = vmatpush1.bf16.msra.mxu0 %v957
    %1087 = vmatprep.subr.bf16.mxu0 %v960
    %1088 = vmatpush1.bf16.msra.mxu0 %v959
    %1089 = vmatprep.subr.bf16.mxu0 %v962
    %1090 = vmatpush1.bf16.msra.mxu0 %v961
    %1091 = vmatprep.subr.bf16.mxu0 %v964
    %1092 = vmatpush1.bf16.msra.mxu0 %v963
    %1093 = vmatprep.subr.bf16.mxu0 %v966
    %1094 = vmatpush1.bf16.msra.mxu0 %v965
    %1095 = vmatprep.subr.bf16.mxu0 %v968
    %1096 = vmatpush1.bf16.msra.mxu0 %v967
    %1097 = vmatprep.subr.bf16.mxu0 %v970
    %1098 = vmatpush1.bf16.msra.mxu0 %v969
    %1099 = vmatprep.subr.bf16.mxu0 %v972
    %1100 = vmatpush1.bf16.msra.mxu0 %v971
    %1101 = vmatprep.subr.bf16.mxu0 %v974
    %1102 = vmatpush1.bf16.msra.mxu0 %v973
    %1103 = vmatprep.subr.bf16.mxu0 %v976
    %1104 = vmatpush1.bf16.msra.mxu0 %v975
    %1105 = vmatprep.subr.bf16.mxu0 %v978
    %1106 = vmatpush1.bf16.msra.mxu0 %v977
    %1107 = vmatprep.mubr.bf16.mxu0 %v676
    %1108 = vmatmul.mubr.bf16.gmra.mrb[0].mxu0 %v675
    %v1109 = vpop.f32.mrb[0].mxu0
    %v1110 = vadd.f32 %v748, %v1109
    %v1111 = vpop.f32.mrb[0].mxu0
    %v1112 = vadd.f32 %v752, %v1111
    %v1113 = vpop.f32.mrb[0].mxu0
    %v1114 = vadd.f32 %v748, %v1113
    %v1115 = vpop.f32.mrb[0].mxu0
    %v1116 = vadd.f32 %v752, %v1115
    %1117 = vdwg.mxu0
    %1118 = vmatprep.subr.bf16.mxu0 %v980
    %1119 = vmatpush1.bf16.msra.mxu0 %v979
    %1120 = vmatprep.subr.bf16.mxu0 %v982
    %1121 = vmatpush1.bf16.msra.mxu0 %v981
    %1122 = vmatprep.subr.bf16.mxu0 %v984
    %1123 = vmatpush1.bf16.msra.mxu0 %v983
    %1124 = vmatprep.subr.bf16.mxu0 %v986
    %1125 = vmatpush1.bf16.msra.mxu0 %v985
    %1126 = vmatprep.subr.bf16.mxu0 %v988
    %1127 = vmatpush1.bf16.msra.mxu0 %v987
    %1128 = vmatprep.subr.bf16.mxu0 %v990
    %1129 = vmatpush1.bf16.msra.mxu0 %v989
    %1130 = vmatprep.subr.bf16.mxu0 %v992
    %1131 = vmatpush1.bf16.msra.mxu0 %v991
    %1132 = vmatprep.subr.bf16.mxu0 %v994
    %1133 = vmatpush1.bf16.msra.mxu0 %v993
    %1134 = vmatprep.subr.bf16.mxu0 %v996
    %1135 = vmatpush1.bf16.msra.mxu0 %v995
    %1136 = vmatprep.subr.bf16.mxu0 %v998
    %1137 = vmatpush1.bf16.msra.mxu0 %v997
    %1138 = vmatprep.subr.bf16.mxu0 %v1000
    %1139 = vmatpush1.bf16.msra.mxu0 %v999
    %1140 = vmatprep.subr.bf16.mxu0 %v1002
    %1141 = vmatpush1.bf16.msra.mxu0 %v1001
    %1142 = vmatprep.subr.bf16.mxu0 %v1004
    %1143 = vmatpush1.bf16.msra.mxu0 %v1003
    %1144 = vmatprep.subr.bf16.mxu0 %v1006
    %1145 = vmatpush1.bf16.msra.mxu0 %v1005
    %1146 = vmatprep.subr.bf16.mxu0 %v1008
    %1147 = vmatpush1.bf16.msra.mxu0 %v1007
    %1148 = vmatprep.subr.bf16.mxu0 %v1010
    %1149 = vmatpush1.bf16.msra.mxu0 %v1009
    %1150 = vmatprep.mubr.bf16.mxu0 %v678
    %1151 = vmatmul.mubr.bf16.gmra.mrb[0].mxu0 %v677
    %v1152 = vpop.f32.mrb[0].mxu0
    %v1153 = vadd.f32 %v1110, %v1152
    %v1154 = vpop.f32.mrb[0].mxu0
    %v1155 = vadd.f32 %v1112, %v1154
    %v1156 = vpop.f32.mrb[0].mxu0
    %v1157 = vadd.f32 %v1114, %v1156
    %v1158 = vpop.f32.mrb[0].mxu0
    %v1159 = vadd.f32 %v1116, %v1158
    %1160 = vdwg.mxu0
    %v1161 = vsub.f32 0.0, %v1153
    %v1162 = vsub.f32 0.0, %v1155
    %v1163 = vsub.f32 0.0, %v1157
    %v1164 = vsub.f32 0.0, %v1159
    %v1165 = vmul.f32 %v1161, 1.442695
    %v1166 = vpow.pop %v1165
    %v1167 = vmul.f32 %v1162, 1.442695
    %v1168 = vpow.pop %v1167
    %v1169 = vmul.f32 %v1163, 1.442695
    %v1170 = vpow.pop %v1169
    %v1171 = vmul.f32 %v1164, 1.442695
    %v1172 = vpow.pop %v1171
    %v1173 = vadd.f32 %v1166, 1.0
    %v1174 = vadd.f32 %v1168, 1.0
    %v1175 = vadd.f32 %v1170, 1.0
    %v1176 = vadd.f32 %v1172, 1.0
    %v1177 = vrcp.pop %v1173
    %v1178 = vrcp.pop %v1174
    %v1179 = vrcp.pop %v1175
    %v1180 = vrcp.pop %v1176
    %v1181 = vpack.c.bf16 %v1179, %v1177
    %v1182 = vpack.c.bf16 %v1180, %v1178
    %v1185 = vunpack.c.l.b16 %v1181
    %v1186 = vunpack.c.l.b16 %v1182
    %v1187 = vunpack.c.h.b16 %v1181
    %v1188 = vunpack.c.h.b16 %v1182
    %v1189 = vpack.c.b16 %v1186, %v1185
    %v1190 = vpack.c.b16 %v1188, %v1187
    %1193 = vst [vmem:[#allocation10] sm:$0xff] %v1189
    %1194 = vst [vmem:[#allocation10 + $0x8] sm:$0xff] %v1190
    // Predicated region
    $region46: #{tpu_custom_call.1} parent=1 // pred_check
      _
    $region47: #{tpu_custom_call.1} parent=1 // pred_check_branch
      %1196 = sbr.rel (0) target = $region49
    $region48: #{tpu_custom_call.1} parent=1 // pred_region
      %s1198 = ssub.s32 256, 256
      %1199 = vsyncadd [#allocation4], %s1198
      %s1200 = sshll.u32 [#allocation10], 4
      %s1201 = int_to_ptr.vmem [resolvable:$true] %s1200
      %1206 = dma.vmem_to_hbm [thread:$0]  %s1201, 256, %s7, [#allocation4], 128, 128, 8
    $region49: #{tpu_custom_call.1} parent=1 // pred_fallthru
      _
    // Predicated region
    $region50: #{tpu_custom_call.1} parent=1 // pred_check
      _
    $region51: #{tpu_custom_call.1} parent=1 // pred_check_branch
      %1208 = sbr.rel (0) target = $region53
    $region52: #{tpu_custom_call.1} parent=1 // pred_region
      %1209 = dma.done [#allocation4], 256
    $region53: #{tpu_custom_call.1} parent=1 // pred_fallthru
      _
    %1210 = vsyncpa [#allocation3], 1
    %1211 = vsyncpa [#allocation6], 1
    %1212 = vsyncpa [#allocation9], 1
    %1213 = vsyncpa [#allocation4], 1

</llo_original>
